<compile_context>
chip_gen: v6e
topology: v6e:2x2x1
jax: 0.10.0
libtpu: 0.0.40
codegen_flags: <defaults>
</compile_context>

<pallas_src>
import functools

import jax
import jax.numpy as jnp
from jax import lax
from jax.experimental import pallas as pl
from jax.experimental.pallas import tpu as pltpu

TM_MAX = 256                    # M tile of the fused conv matmul (v7x-safe)
TM_POOL_MAX = 512               # M tile of the maxpool reduction
VMEM_LIMIT = 32 * 1024 * 1024   # explicit scoped-VMEM budget (fits v5e..v7x)


# --------------------------------------------------------------------------
# Pallas kernels
# --------------------------------------------------------------------------
def conv_bn_act_kernel(x_ref, w_ref, shift_ref, o_ref, *, apply_relu):
    """(tm, K)bf16 @ (K, Co)bf16 on the MXU, f32 acc, + BN shift (+ ReLU)."""
    y = jnp.dot(x_ref[...], w_ref[...], preferred_element_type=jnp.float32)
    y = y + shift_ref[...]
    if apply_relu:
        y = jnp.maximum(y, 0.0)
    o_ref[...] = y.astype(o_ref.dtype)


def conv_bn_res_act_kernel(x_ref, w_ref, shift_ref, res_ref, o_ref,
                           *, apply_relu):
    """Same as above, plus a fused residual add before the activation."""
    y = jnp.dot(x_ref[...], w_ref[...], preferred_element_type=jnp.float32)
    y = y + shift_ref[...] + res_ref[...]
    if apply_relu:
        y = jnp.maximum(y, 0.0)
    o_ref[...] = y.astype(o_ref.dtype)


def maxpool_kernel(x_ref, o_ref):
    """x_ref: (KK, tm, C) window taps -> elementwise max over the KK taps."""
    kk = x_ref.shape[0]
    m = x_ref[0]
    for t in range(1, kk):          # 9-way maximum tree (VPU, leading axis)
        m = jnp.maximum(m, x_ref[t])
    o_ref[...] = m


# --------------------------------------------------------------------------
# Glue helpers (plain JAX)
# --------------------------------------------------------------------------
def _round_up(x, m):
    return ((x + m - 1) // m) * m


def fold_bn(p, eps=1e-5):
    scale = p["gamma"] / jnp.sqrt(p["var"] + eps)
    shift = p["beta"] - p["mean"] * scale
    return scale, shift


def _patch_slices(x, kh, kw, stride, pad, pad_value=0.0):
    """Shifted/strided views of the spatially-padded NHWC input, one per tap.

    Returns (list of (N, Ho, Wo, C) slices in (dy, dx) order, (Ho, Wo)).
    """
    N, H, W, C = x.shape
    Ho = (H + 2 * pad - kh) // stride + 1
    Wo = (W + 2 * pad - kw) // stride + 1
    xp = jnp.pad(x, ((0, 0), (pad, pad), (pad, pad), (0, 0)),
                 constant_values=pad_value)
    sls = []
    for dy in range(kh):
        for dx in range(kw):
            sls.append(xp[:, dy:dy + stride * (Ho - 1) + 1:stride,
                          dx:dx + stride * (Wo - 1) + 1:stride, :])
    return sls, (Ho, Wo)


# --------------------------------------------------------------------------
# Fused conv + BN (+residual) (+ReLU) via the Pallas matmul kernels
# --------------------------------------------------------------------------
def fused_conv_matmul(p2d, w2d, shift, res2d, apply_relu):
    """p2d: (M, K) bf16 patches, w2d: (K, Co) bf16 (BN scale folded in),
    shift: (Co,) f32, res2d: (M, Co) f32 or None. Returns (M, Co) f32."""
    M, K = p2d.shape
    Co = w2d.shape[1]

    # Zero-pad only the contraction dim to a lane multiple so the in-kernel
    # matmul never relies on masking of K padding. This is a no-op for real
    # ResNet 3x3 convs (9 * {64,128,256,512} is already 128-aligned).
    Kp = _round_up(K, 128)
    if Kp != K:
        p2d = jnp.pad(p2d, ((0, 0), (0, Kp - K)))
        w2d = jnp.pad(w2d, ((0, Kp - K), (0, 0)))

    tm = min(TM_MAX, M)             # full-M block when small, 256 otherwise
    grid = (pl.cdiv(M, tm),)        # ragged tail handled by Pallas masking
    shift2d = shift.reshape(1, Co)

    x_spec = pl.BlockSpec((tm, Kp), lambda i: (i, 0))
    w_spec = pl.BlockSpec((Kp, Co), lambda i: (0, 0))
    s_spec = pl.BlockSpec((1, Co), lambda i: (0, 0))
    o_spec = pl.BlockSpec((tm, Co), lambda i: (i, 0))
    cparams = pltpu.CompilerParams(
        dimension_semantics=("parallel",),
        vmem_limit_bytes=VMEM_LIMIT)
    out_shape = jax.ShapeDtypeStruct((M, Co), jnp.float32)

    if res2d is None:
        return pl.pallas_call(
            functools.partial(conv_bn_act_kernel, apply_relu=apply_relu),
            out_shape=out_shape, grid=grid,
            in_specs=[x_spec, w_spec, s_spec], out_specs=o_spec,
            compiler_params=cparams,
        )(p2d, w2d, shift2d)

    r_spec = pl.BlockSpec((tm, Co), lambda i: (i, 0))
    return pl.pallas_call(
        functools.partial(conv_bn_res_act_kernel, apply_relu=apply_relu),
        out_shape=out_shape, grid=grid,
        in_specs=[x_spec, w_spec, s_spec, r_spec], out_specs=o_spec,
        compiler_params=cparams,
    )(p2d, w2d, shift2d, res2d)


def conv_bn_act(x, p, kh, kw, stride, pad, relu, residual=None):
    """x: (N,H,W,Cin) f32 NHWC; p['w']: (kh,kw,Cin,Cout) HWIO. Returns f32."""
    N, H, W, Cin = x.shape
    Cout = p["w"].shape[-1]
    scale, shift = fold_bn(p)
    # BN scale folded into the weights; operands cast to bf16, f32 accumulate.
    w2d = (p["w"].reshape(kh * kw * Cin, Cout)
           * scale[None, :]).astype(jnp.bfloat16)
    sls, (Ho, Wo) = _patch_slices(x.astype(jnp.bfloat16), kh, kw, stride, pad)
    p2d = jnp.concatenate(sls, axis=-1).reshape(N * Ho * Wo, kh * kw * Cin)
    r2d = (residual.reshape(N * Ho * Wo, Cout)
           if residual is not None else None)
    out2d = fused_conv_matmul(p2d, w2d, shift, r2d, relu)
    return out2d.reshape(N, Ho, Wo, Cout)


def maxpool_3x3_s2_p1(x):
    """MaxPool2d(kernel_size=3, stride=2, padding=1) on NHWC f32 via Pallas."""
    N, H, W, C = x.shape
    k = 3
    sls, (Ho, Wo) = _patch_slices(x, k, k, 2, 1, pad_value=float("-inf"))
    M = N * Ho * Wo
    pt = jnp.stack(sls, axis=0).reshape(k * k, M, C)   # (KK, M, C), no transpose
    tm = min(TM_POOL_MAX, M)
    out = pl.pallas_call(
        maxpool_kernel,
        out_shape=jax.ShapeDtypeStruct((M, C), jnp.float32),
        grid=(pl.cdiv(M, tm),),
        in_specs=[pl.BlockSpec((k * k, tm, C), lambda i: (0, i, 0))],
        out_specs=pl.BlockSpec((tm, C), lambda i: (i, 0)),
        compiler_params=pltpu.CompilerParams(
            dimension_semantics=("parallel",),
            vmem_limit_bytes=VMEM_LIMIT),
    )(pt)
    return out.reshape(N, Ho, Wo, C)


# --------------------------------------------------------------------------
# ResNet structure (basic block, expansion = 1)
# --------------------------------------------------------------------------
def basic_block(x, blk):
    ds = blk["downsampling"]
    if "shortcut" in blk:
        residual = conv_bn_act(x, blk["shortcut"], 1, 1, ds, 0, relu=False)
    else:
        residual = x
    h = conv_bn_act(x, blk["conv1"], 3, 3, ds, 1, relu=True)
    # second conv: BN -> add residual -> ReLU, all fused in one kernel
    return conv_bn_act(h, blk["conv2"], 3, 3, 1, 1, relu=True,
                       residual=residual)


def encoder_forward(x_nchw, params):
    x = jnp.transpose(x_nchw, (0, 2, 3, 1))  # NCHW -> NHWC
    # gate: Conv7x7/2 + BN + ReLU + MaxPool3x3/2
    x = conv_bn_act(x, params["gate"], 7, 7, 2, 3, relu=True)
    x = maxpool_3x3_s2_p1(x)
    for layer in params["layers"]:
        for blk in layer:
            x = basic_block(x, blk)
    return jnp.transpose(x, (0, 3, 1, 2))  # NHWC -> NCHW


# --------------------------------------------------------------------------
# Deterministic parameter init
# --------------------------------------------------------------------------
def init_conv_bn(key, kh, kw, cin, cout):
    k1, k2, k3, k4, k5 = jax.random.split(key, 5)
    fan_in = kh * kw * cin
    return dict(
        w=jax.random.normal(k1, (kh, kw, cin, cout), jnp.float32)
        * (1.0 / jnp.sqrt(float(fan_in))),
        gamma=1.0 + 0.1 * jax.random.normal(k2, (cout,), jnp.float32),
        beta=0.1 * jax.random.normal(k3, (cout,), jnp.float32),
        mean=0.1 * jax.random.normal(k4, (cout,), jnp.float32),
        var=jnp.abs(1.0 + 0.1 * jax.random.normal(k5, (cout,), jnp.float32)),
    )


def init_encoder_params(key, in_channels, blocks_sizes, depths, expansion=1):
    keys = iter(jax.random.split(key, 64))
    params = {"gate": init_conv_bn(next(keys), 7, 7, in_channels,
                                   blocks_sizes[0])}
    layer_io = [(blocks_sizes[0], blocks_sizes[0])] + list(
        zip(blocks_sizes, blocks_sizes[1:]))
    layers = []
    for (cin, cout), n in zip(layer_io, depths):
        blocks = []
        for b in range(n):
            bin_c = cin if b == 0 else cout * expansion
            ds = 2 if (b == 0 and cin != cout) else 1
            blk = {
                "downsampling": ds,
                "conv1": init_conv_bn(next(keys), 3, 3, bin_c, cout),
                "conv2": init_conv_bn(next(keys), 3, 3, cout,
                                      cout * expansion),
            }
            if ds != 1 or bin_c != cout * expansion:
                blk["shortcut"] = init_conv_bn(next(keys), 1, 1, bin_c,
                                               cout * expansion)
            blocks.append(blk)
        layers.append(blocks)
    params["layers"] = layers
    return params


# --------------------------------------------------------------------------
# Plain-JAX reference (same arithmetic contract: bf16 operands, f32 acc)
# --------------------------------------------------------------------------
def ref_conv_bn_act(x, p, stride, pad, relu, residual=None):
    scale, shift = fold_bn(p)
    w = (p["w"] * scale[None, None, None, :]).astype(jnp.bfloat16)
    y = lax.conv_general_dilated(
        x.astype(jnp.bfloat16), w, (stride, stride), [(pad, pad), (pad, pad)],
        dimension_numbers=("NHWC", "HWIO", "NHWC"),
        preferred_element_type=jnp.float32)
    y = y + shift
    if residual is not None:
        y = y + residual
    if relu:
        y = jnp.maximum(y, 0.0)
    return y


def encoder_reference(x_nchw, params):
    x = jnp.transpose(x_nchw, (0, 2, 3, 1))
    x = ref_conv_bn_act(x, params["gate"], 2, 3, True)
    x = lax.reduce_window(x, -jnp.inf, lax.max, (1, 3, 3, 1), (1, 2, 2, 1),
                          [(0, 0), (1, 1), (1, 1), (0, 0)])
    for layer in params["layers"]:
        for blk in layer:
            ds = blk["downsampling"]
            if "shortcut" in blk:
                residual = ref_conv_bn_act(x, blk["shortcut"], ds, 0, False)
            else:
                residual = x
            h = ref_conv_bn_act(x, blk["conv1"], ds, 1, True)
            x = ref_conv_bn_act(h, blk["conv2"], 1, 1, True, residual)
    return jnp.transpose(x, (0, 3, 1, 2))


# --------------------------------------------------------------------------
if __name__ == "__main__":
    key = jax.random.PRNGKey(0)
    kx, kp = jax.random.split(key)

    # small config: in_channels=4, blocks_sizes=[8, 16], depths=[1, 1]
    x = jax.random.normal(kx, (2, 4, 16, 16), jnp.float32)  # NCHW like PyTorch
    params = init_encoder_params(kp, in_channels=4, blocks_sizes=[8, 16],
                                 depths=[1, 1])

    fwd = jax.jit(lambda inp: encoder_forward(inp, params))
    out = jax.block_until_ready(fwd(x))
    assert out.shape == (2, 16, 2, 2), out.shape

    ref = encoder_reference(x, params)
    err = float(jnp.max(jnp.abs(out - ref)))
    assert jnp.allclose(out, ref, atol=2e-3, rtol=2e-3), err

    print("KERNEL_OK")
</pallas_src>

<mosaic_0001>
module attributes {stable_mosaic.version = 11 : i64} {
  func.func @conv_bn_act_kernel(%arg0: i32, %arg1: memref<128x256xbf16, #tpu.memory_space<vmem>>, %arg2: memref<256x8xbf16, #tpu.memory_space<vmem>>, %arg3: memref<1x8xf32, #tpu.memory_space<vmem>>, %arg4: memref<128x8xf32, #tpu.memory_space<vmem>>) attributes {dimension_semantics = [#tpu.dimension_semantics<parallel>], iteration_bounds = array<i64: 1>, scalar_prefetch = 0 : i64, scratch_operands = 0 : i64, tpu.core_type = #tpu.core_type<tc>, window_params = [{transform_indices = @transform_0, window_bounds = array<i64: 128, 256>}, {pipeline_mode = #tpu.pipeline_mode<synchronous>, transform_indices = @transform_1, window_bounds = array<i64: 256, 8>}, {pipeline_mode = #tpu.pipeline_mode<synchronous>, transform_indices = @transform_2, window_bounds = array<i64: 1, 8>}, {transform_indices = @transform_3, window_bounds = array<i64: 128, 8>}]} {
    %c0 = arith.constant 0 : index
    %c0_0 = arith.constant 0 : index
    %0 = vector.load %arg1[%c0, %c0_0] : memref<128x256xbf16, #tpu.memory_space<vmem>>, vector<128x256xbf16>
    %c0_1 = arith.constant 0 : index
    %c0_2 = arith.constant 0 : index
    %1 = vector.load %arg2[%c0_1, %c0_2] : memref<256x8xbf16, #tpu.memory_space<vmem>>, vector<256x8xbf16>
    %cst = arith.constant dense<0.000000e+00> : vector<128x8xf32>
    %2 = tpu.matmul %0, %1, %cst {dimension_numbers = #tpu.dot_dimension_numbers<[1], [0], [0], [1], [0, 0, 1, 1], [], []>} : vector<128x256xbf16>, vector<256x8xbf16>, vector<128x8xf32> -> vector<128x8xf32>
    %c0_3 = arith.constant 0 : index
    %c0_4 = arith.constant 0 : index
    %3 = vector.load %arg3[%c0_3, %c0_4] : memref<1x8xf32, #tpu.memory_space<vmem>>, vector<1x8xf32>
    %4 = vector.broadcast %3 : vector<1x8xf32> to vector<128x8xf32>
    %5 = arith.addf %2, %4 : vector<128x8xf32>
    %cst_5 = arith.constant 0.000000e+00 : f32
    %6 = vector.broadcast %cst_5 : f32 to vector<128x8xf32>
    %7 = arith.maximumf %5, %6 : vector<128x8xf32>
    %c0_6 = arith.constant 0 : index
    %c0_7 = arith.constant 0 : index
    %8 = vector.load %arg4[%c0_6, %c0_7] : memref<128x8xf32, #tpu.memory_space<vmem>>, vector<128x8xf32>
    tpu.vector_store %arg4[%c0_6, %c0_7], %7 {strides = array<i32>} : memref<128x8xf32, #tpu.memory_space<vmem>>, vector<128x8xf32>,
    return
  }
  func.func @transform_0(%arg0: i32) -> (i32, i32) {
    %c0_i32 = arith.constant 0 : i32
    %c0_i32_0 = arith.constant 0 : i32
    return %arg0, %c0_i32 : i32, i32
  }
  func.func @transform_1(%arg0: i32) -> (i32, i32) {
    %c0_i32 = arith.constant 0 : i32
    %c0_i32_0 = arith.constant 0 : i32
    %c0_i32_1 = arith.constant 0 : i32
    return %c0_i32, %c0_i32_0 : i32, i32
  }
  func.func @transform_2(%arg0: i32) -> (i32, i32) {
    %c0_i32 = arith.constant 0 : i32
    %c0_i32_0 = arith.constant 0 : i32
    %c0_i32_1 = arith.constant 0 : i32
    return %c0_i32, %c0_i32_0 : i32, i32
  }
  func.func @transform_3(%arg0: i32) -> (i32, i32) {
    %c0_i32 = arith.constant 0 : i32
    %c0_i32_0 = arith.constant 0 : i32
    return %arg0, %c0_i32 : i32, i32
  }
}

module attributes {stable_mosaic.version = 11 : i64} {
  func.func @maxpool_kernel(%arg0: i32, %arg1: memref<9x32x8xf32, #tpu.memory_space<vmem>>, %arg2: memref<32x8xf32, #tpu.memory_space<vmem>>) attributes {dimension_semantics = [#tpu.dimension_semantics<parallel>], iteration_bounds = array<i64: 1>, scalar_prefetch = 0 : i64, scratch_operands = 0 : i64, tpu.core_type = #tpu.core_type<tc>, window_params = [{transform_indices = @transform_0, window_bounds = array<i64: 9, 32, 8>}, {transform_indices = @transform_1, window_bounds = array<i64: 32, 8>}]} {
    %c0 = arith.constant 0 : index
    %c0_0 = arith.constant 0 : index
    %c0_1 = arith.constant 0 : index
    %0 = vector.load %arg1[%c0, %c0_0, %c0_1] : memref<9x32x8xf32, #tpu.memory_space<vmem>>, vector<1x32x8xf32>
    %1 = vector.shape_cast %0 : vector<1x32x8xf32> to vector<32x8xf32>
    %c1 = arith.constant 1 : index
    %c0_2 = arith.constant 0 : index
    %c0_3 = arith.constant 0 : index
    %2 = vector.load %arg1[%c1, %c0_2, %c0_3] : memref<9x32x8xf32, #tpu.memory_space<vmem>>, vector<1x32x8xf32>
    %3 = vector.shape_cast %2 : vector<1x32x8xf32> to vector<32x8xf32>
    %4 = arith.maximumf %1, %3 : vector<32x8xf32>
    %c2 = arith.constant 2 : index
    %c0_4 = arith.constant 0 : index
    %c0_5 = arith.constant 0 : index
    %5 = vector.load %arg1[%c2, %c0_4, %c0_5] : memref<9x32x8xf32, #tpu.memory_space<vmem>>, vector<1x32x8xf32>
    %6 = vector.shape_cast %5 : vector<1x32x8xf32> to vector<32x8xf32>
    %7 = arith.maximumf %4, %6 : vector<32x8xf32>
    %c3 = arith.constant 3 : index
    %c0_6 = arith.constant 0 : index
    %c0_7 = arith.constant 0 : index
    %8 = vector.load %arg1[%c3, %c0_6, %c0_7] : memref<9x32x8xf32, #tpu.memory_space<vmem>>, vector<1x32x8xf32>
    %9 = vector.shape_cast %8 : vector<1x32x8xf32> to vector<32x8xf32>
    %10 = arith.maximumf %7, %9 : vector<32x8xf32>
    %c4 = arith.constant 4 : index
    %c0_8 = arith.constant 0 : index
    %c0_9 = arith.constant 0 : index
    %11 = vector.load %arg1[%c4, %c0_8, %c0_9] : memref<9x32x8xf32, #tpu.memory_space<vmem>>, vector<1x32x8xf32>
    %12 = vector.shape_cast %11 : vector<1x32x8xf32> to vector<32x8xf32>
    %13 = arith.maximumf %10, %12 : vector<32x8xf32>
    %c5 = arith.constant 5 : index
    %c0_10 = arith.constant 0 : index
    %c0_11 = arith.constant 0 : index
    %14 = vector.load %arg1[%c5, %c0_10, %c0_11] : memref<9x32x8xf32, #tpu.memory_space<vmem>>, vector<1x32x8xf32>
    %15 = vector.shape_cast %14 : vector<1x32x8xf32> to vector<32x8xf32>
    %16 = arith.maximumf %13, %15 : vector<32x8xf32>
    %c6 = arith.constant 6 : index
    %c0_12 = arith.constant 0 : index
    %c0_13 = arith.constant 0 : index
    %17 = vector.load %arg1[%c6, %c0_12, %c0_13] : memref<9x32x8xf32, #tpu.memory_space<vmem>>, vector<1x32x8xf32>
    %18 = vector.shape_cast %17 : vector<1x32x8xf32> to vector<32x8xf32>
    %19 = arith.maximumf %16, %18 : vector<32x8xf32>
    %c7 = arith.constant 7 : index
    %c0_14 = arith.constant 0 : index
    %c0_15 = arith.constant 0 : index
    %20 = vector.load %arg1[%c7, %c0_14, %c0_15] : memref<9x32x8xf32, #tpu.memory_space<vmem>>, vector<1x32x8xf32>
    %21 = vector.shape_cast %20 : vector<1x32x8xf32> to vector<32x8xf32>
    %22 = arith.maximumf %19, %21 : vector<32x8xf32>
    %c8 = arith.constant 8 : index
    %c0_16 = arith.constant 0 : index
    %c0_17 = arith.constant 0 : index
    %23 = vector.load %arg1[%c8, %c0_16, %c0_17] : memref<9x32x8xf32, #tpu.memory_space<vmem>>, vector<1x32x8xf32>
    %24 = vector.shape_cast %23 : vector<1x32x8xf32> to vector<32x8xf32>
    %25 = arith.maximumf %22, %24 : vector<32x8xf32>
    %c0_18 = arith.constant 0 : index
    %c0_19 = arith.constant 0 : index
    %26 = vector.load %arg2[%c0_18, %c0_19] : memref<32x8xf32, #tpu.memory_space<vmem>>, vector<32x8xf32>
    tpu.vector_store %arg2[%c0_18, %c0_19], %25 {strides = array<i32>} : memref<32x8xf32, #tpu.memory_space<vmem>>, vector<32x8xf32>,
    return
  }
  func.func @transform_0(%arg0: i32) -> (i32, i32, i32) {
    %c0_i32 = arith.constant 0 : i32
    %c0_i32_0 = arith.constant 0 : i32
    %c0_i32_1 = arith.constant 0 : i32
    return %c0_i32, %arg0, %c0_i32_0 : i32, i32, i32
  }
  func.func @transform_1(%arg0: i32) -> (i32, i32) {
    %c0_i32 = arith.constant 0 : i32
    %c0_i32_0 = arith.constant 0 : i32
    return %arg0, %c0_i32 : i32, i32
  }
}

module attributes {stable_mosaic.version = 11 : i64} {
  func.func @conv_bn_act_kernel(%arg0: i32, %arg1: memref<32x128xbf16, #tpu.memory_space<vmem>>, %arg2: memref<128x8xbf16, #tpu.memory_space<vmem>>, %arg3: memref<1x8xf32, #tpu.memory_space<vmem>>, %arg4: memref<32x8xf32, #tpu.memory_space<vmem>>) attributes {dimension_semantics = [#tpu.dimension_semantics<parallel>], iteration_bounds = array<i64: 1>, scalar_prefetch = 0 : i64, scratch_operands = 0 : i64, tpu.core_type = #tpu.core_type<tc>, window_params = [{transform_indices = @transform_0, window_bounds = array<i64: 32, 128>}, {pipeline_mode = #tpu.pipeline_mode<synchronous>, transform_indices = @transform_1, window_bounds = array<i64: 128, 8>}, {pipeline_mode = #tpu.pipeline_mode<synchronous>, transform_indices = @transform_2, window_bounds = array<i64: 1, 8>}, {transform_indices = @transform_3, window_bounds = array<i64: 32, 8>}]} {
    %c0 = arith.constant 0 : index
    %c0_0 = arith.constant 0 : index
    %0 = vector.load %arg1[%c0, %c0_0] : memref<32x128xbf16, #tpu.memory_space<vmem>>, vector<32x128xbf16>
    %c0_1 = arith.constant 0 : index
    %c0_2 = arith.constant 0 : index
    %1 = vector.load %arg2[%c0_1, %c0_2] : memref<128x8xbf16, #tpu.memory_space<vmem>>, vector<128x8xbf16>
    %cst = arith.constant dense<0.000000e+00> : vector<32x8xf32>
    %2 = tpu.matmul %0, %1, %cst {dimension_numbers = #tpu.dot_dimension_numbers<[1], [0], [0], [1], [0, 0, 1, 1], [], []>} : vector<32x128xbf16>, vector<128x8xbf16>, vector<32x8xf32> -> vector<32x8xf32>
    %c0_3 = arith.constant 0 : index
    %c0_4 = arith.constant 0 : index
    %3 = vector.load %arg3[%c0_3, %c0_4] : memref<1x8xf32, #tpu.memory_space<vmem>>, vector<1x8xf32>
    %4 = vector.broadcast %3 : vector<1x8xf32> to vector<32x8xf32>
    %5 = arith.addf %2, %4 : vector<32x8xf32>
    %cst_5 = arith.constant 0.000000e+00 : f32
    %6 = vector.broadcast %cst_5 : f32 to vector<32x8xf32>
    %7 = arith.maximumf %5, %6 : vector<32x8xf32>
    %c0_6 = arith.constant 0 : index
    %c0_7 = arith.constant 0 : index
    %8 = vector.load %arg4[%c0_6, %c0_7] : memref<32x8xf32, #tpu.memory_space<vmem>>, vector<32x8xf32>
    tpu.vector_store %arg4[%c0_6, %c0_7], %7 {strides = array<i32>} : memref<32x8xf32, #tpu.memory_space<vmem>>, vector<32x8xf32>,
    return
  }
  func.func @transform_0(%arg0: i32) -> (i32, i32) {
    %c0_i32 = arith.constant 0 : i32
    %c0_i32_0 = arith.constant 0 : i32
    return %arg0, %c0_i32 : i32, i32
  }
  func.func @transform_1(%arg0: i32) -> (i32, i32) {
    %c0_i32 = arith.constant 0 : i32
    %c0_i32_0 = arith.constant 0 : i32
    %c0_i32_1 = arith.constant 0 : i32
    return %c0_i32, %c0_i32_0 : i32, i32
  }
  func.func @transform_2(%arg0: i32) -> (i32, i32) {
    %c0_i32 = arith.constant 0 : i32
    %c0_i32_0 = arith.constant 0 : i32
    %c0_i32_1 = arith.constant 0 : i32
    return %c0_i32, %c0_i32_0 : i32, i32
  }
  func.func @transform_3(%arg0: i32) -> (i32, i32) {
    %c0_i32 = arith.constant 0 : i32
    %c0_i32_0 = arith.constant 0 : i32
    return %arg0, %c0_i32 : i32, i32
  }
}

module attributes {stable_mosaic.version = 11 : i64} {
  func.func @conv_bn_res_act_kernel(%arg0: i32, %arg1: memref<32x128xbf16, #tpu.memory_space<vmem>>, %arg2: memref<128x8xbf16, #tpu.memory_space<vmem>>, %arg3: memref<1x8xf32, #tpu.memory_space<vmem>>, %arg4: memref<32x8xf32, #tpu.memory_space<vmem>>, %arg5: memref<32x8xf32, #tpu.memory_space<vmem>>) attributes {dimension_semantics = [#tpu.dimension_semantics<parallel>], iteration_bounds = array<i64: 1>, scalar_prefetch = 0 : i64, scratch_operands = 0 : i64, tpu.core_type = #tpu.core_type<tc>, window_params = [{transform_indices = @transform_0, window_bounds = array<i64: 32, 128>}, {pipeline_mode = #tpu.pipeline_mode<synchronous>, transform_indices = @transform_1, window_bounds = array<i64: 128, 8>}, {pipeline_mode = #tpu.pipeline_mode<synchronous>, transform_indices = @transform_2, window_bounds = array<i64: 1, 8>}, {transform_indices = @transform_3, window_bounds = array<i64: 32, 8>}, {transform_indices = @transform_4, window_bounds = array<i64: 32, 8>}]} {
    %c0 = arith.constant 0 : index
    %c0_0 = arith.constant 0 : index
    %0 = vector.load %arg1[%c0, %c0_0] : memref<32x128xbf16, #tpu.memory_space<vmem>>, vector<32x128xbf16>
    %c0_1 = arith.constant 0 : index
    %c0_2 = arith.constant 0 : index
    %1 = vector.load %arg2[%c0_1, %c0_2] : memref<128x8xbf16, #tpu.memory_space<vmem>>, vector<128x8xbf16>
    %cst = arith.constant dense<0.000000e+00> : vector<32x8xf32>
    %2 = tpu.matmul %0, %1, %cst {dimension_numbers = #tpu.dot_dimension_numbers<[1], [0], [0], [1], [0, 0, 1, 1], [], []>} : vector<32x128xbf16>, vector<128x8xbf16>, vector<32x8xf32> -> vector<32x8xf32>
    %c0_3 = arith.constant 0 : index
    %c0_4 = arith.constant 0 : index
    %3 = vector.load %arg3[%c0_3, %c0_4] : memref<1x8xf32, #tpu.memory_space<vmem>>, vector<1x8xf32>
    %4 = vector.broadcast %3 : vector<1x8xf32> to vector<32x8xf32>
    %5 = arith.addf %2, %4 : vector<32x8xf32>
    %c0_5 = arith.constant 0 : index
    %c0_6 = arith.constant 0 : index
    %6 = vector.load %arg4[%c0_5, %c0_6] : memref<32x8xf32, #tpu.memory_space<vmem>>, vector<32x8xf32>
    %7 = arith.addf %5, %6 : vector<32x8xf32>
    %cst_7 = arith.constant 0.000000e+00 : f32
    %8 = vector.broadcast %cst_7 : f32 to vector<32x8xf32>
    %9 = arith.maximumf %7, %8 : vector<32x8xf32>
    %c0_8 = arith.constant 0 : index
    %c0_9 = arith.constant 0 : index
    %10 = vector.load %arg5[%c0_8, %c0_9] : memref<32x8xf32, #tpu.memory_space<vmem>>, vector<32x8xf32>
    tpu.vector_store %arg5[%c0_8, %c0_9], %9 {strides = array<i32>} : memref<32x8xf32, #tpu.memory_space<vmem>>, vector<32x8xf32>,
    return
  }
  func.func @transform_0(%arg0: i32) -> (i32, i32) {
    %c0_i32 = arith.constant 0 : i32
    %c0_i32_0 = arith.constant 0 : i32
    return %arg0, %c0_i32 : i32, i32
  }
  func.func @transform_1(%arg0: i32) -> (i32, i32) {
    %c0_i32 = arith.constant 0 : i32
    %c0_i32_0 = arith.constant 0 : i32
    %c0_i32_1 = arith.constant 0 : i32
    return %c0_i32, %c0_i32_0 : i32, i32
  }
  func.func @transform_2(%arg0: i32) -> (i32, i32) {
    %c0_i32 = arith.constant 0 : i32
    %c0_i32_0 = arith.constant 0 : i32
    %c0_i32_1 = arith.constant 0 : i32
    return %c0_i32, %c0_i32_0 : i32, i32
  }
  func.func @transform_3(%arg0: i32) -> (i32, i32) {
    %c0_i32 = arith.constant 0 : i32
    %c0_i32_0 = arith.constant 0 : i32
    return %arg0, %c0_i32 : i32, i32
  }
  func.func @transform_4(%arg0: i32) -> (i32, i32) {
    %c0_i32 = arith.constant 0 : i32
    %c0_i32_0 = arith.constant 0 : i32
    return %arg0, %c0_i32 : i32, i32
  }
}

module attributes {stable_mosaic.version = 11 : i64} {
  func.func @conv_bn_act_kernel(%arg0: i32, %arg1: memref<8x128xbf16, #tpu.memory_space<vmem>>, %arg2: memref<128x16xbf16, #tpu.memory_space<vmem>>, %arg3: memref<1x16xf32, #tpu.memory_space<vmem>>, %arg4: memref<8x16xf32, #tpu.memory_space<vmem>>) attributes {dimension_semantics = [#tpu.dimension_semantics<parallel>], iteration_bounds = array<i64: 1>, scalar_prefetch = 0 : i64, scratch_operands = 0 : i64, tpu.core_type = #tpu.core_type<tc>, window_params = [{transform_indices = @transform_0, window_bounds = array<i64: 8, 128>}, {pipeline_mode = #tpu.pipeline_mode<synchronous>, transform_indices = @transform_1, window_bounds = array<i64: 128, 16>}, {pipeline_mode = #tpu.pipeline_mode<synchronous>, transform_indices = @transform_2, window_bounds = array<i64: 1, 16>}, {transform_indices = @transform_3, window_bounds = array<i64: 8, 16>}]} {
    %c0 = arith.constant 0 : index
    %c0_0 = arith.constant 0 : index
    %0 = vector.load %arg1[%c0, %c0_0] : memref<8x128xbf16, #tpu.memory_space<vmem>>, vector<8x128xbf16>
    %c0_1 = arith.constant 0 : index
    %c0_2 = arith.constant 0 : index
    %1 = vector.load %arg2[%c0_1, %c0_2] : memref<128x16xbf16, #tpu.memory_space<vmem>>, vector<128x16xbf16>
    %cst = arith.constant dense<0.000000e+00> : vector<8x16xf32>
    %2 = tpu.matmul %0, %1, %cst {dimension_numbers = #tpu.dot_dimension_numbers<[1], [0], [0], [1], [0, 0, 1, 1], [], []>} : vector<8x128xbf16>, vector<128x16xbf16>, vector<8x16xf32> -> vector<8x16xf32>
    %c0_3 = arith.constant 0 : index
    %c0_4 = arith.constant 0 : index
    %3 = vector.load %arg3[%c0_3, %c0_4] : memref<1x16xf32, #tpu.memory_space<vmem>>, vector<1x16xf32>
    %4 = vector.broadcast %3 : vector<1x16xf32> to vector<8x16xf32>
    %5 = arith.addf %2, %4 : vector<8x16xf32>
    %c0_5 = arith.constant 0 : index
    %c0_6 = arith.constant 0 : index
    %6 = vector.load %arg4[%c0_5, %c0_6] : memref<8x16xf32, #tpu.memory_space<vmem>>, vector<8x16xf32>
    tpu.vector_store %arg4[%c0_5, %c0_6], %5 {strides = array<i32>} : memref<8x16xf32, #tpu.memory_space<vmem>>, vector<8x16xf32>,
    return
  }
  func.func @transform_0(%arg0: i32) -> (i32, i32) {
    %c0_i32 = arith.constant 0 : i32
    %c0_i32_0 = arith.constant 0 : i32
    return %arg0, %c0_i32 : i32, i32
  }
  func.func @transform_1(%arg0: i32) -> (i32, i32) {
    %c0_i32 = arith.constant 0 : i32
    %c0_i32_0 = arith.constant 0 : i32
    %c0_i32_1 = arith.constant 0 : i32
    return %c0_i32, %c0_i32_0 : i32, i32
  }
  func.func @transform_2(%arg0: i32) -> (i32, i32) {
    %c0_i32 = arith.constant 0 : i32
    %c0_i32_0 = arith.constant 0 : i32
    %c0_i32_1 = arith.constant 0 : i32
    return %c0_i32, %c0_i32_0 : i32, i32
  }
  func.func @transform_3(%arg0: i32) -> (i32, i32) {
    %c0_i32 = arith.constant 0 : i32
    %c0_i32_0 = arith.constant 0 : i32
    return %arg0, %c0_i32 : i32, i32
  }
}

module attributes {stable_mosaic.version = 11 : i64} {
  func.func @conv_bn_act_kernel(%arg0: i32, %arg1: memref<8x128xbf16, #tpu.memory_space<vmem>>, %arg2: memref<128x16xbf16, #tpu.memory_space<vmem>>, %arg3: memref<1x16xf32, #tpu.memory_space<vmem>>, %arg4: memref<8x16xf32, #tpu.memory_space<vmem>>) attributes {dimension_semantics = [#tpu.dimension_semantics<parallel>], iteration_bounds = array<i64: 1>, scalar_prefetch = 0 : i64, scratch_operands = 0 : i64, tpu.core_type = #tpu.core_type<tc>, window_params = [{transform_indices = @transform_0, window_bounds = array<i64: 8, 128>}, {pipeline_mode = #tpu.pipeline_mode<synchronous>, transform_indices = @transform_1, window_bounds = array<i64: 128, 16>}, {pipeline_mode = #tpu.pipeline_mode<synchronous>, transform_indices = @transform_2, window_bounds = array<i64: 1, 16>}, {transform_indices = @transform_3, window_bounds = array<i64: 8, 16>}]} {
    %c0 = arith.constant 0 : index
    %c0_0 = arith.constant 0 : index
    %0 = vector.load %arg1[%c0, %c0_0] : memref<8x128xbf16, #tpu.memory_space<vmem>>, vector<8x128xbf16>
    %c0_1 = arith.constant 0 : index
    %c0_2 = arith.constant 0 : index
    %1 = vector.load %arg2[%c0_1, %c0_2] : memref<128x16xbf16, #tpu.memory_space<vmem>>, vector<128x16xbf16>
    %cst = arith.constant dense<0.000000e+00> : vector<8x16xf32>
    %2 = tpu.matmul %0, %1, %cst {dimension_numbers = #tpu.dot_dimension_numbers<[1], [0], [0], [1], [0, 0, 1, 1], [], []>} : vector<8x128xbf16>, vector<128x16xbf16>, vector<8x16xf32> -> vector<8x16xf32>
    %c0_3 = arith.constant 0 : index
    %c0_4 = arith.constant 0 : index
    %3 = vector.load %arg3[%c0_3, %c0_4] : memref<1x16xf32, #tpu.memory_space<vmem>>, vector<1x16xf32>
    %4 = vector.broadcast %3 : vector<1x16xf32> to vector<8x16xf32>
    %5 = arith.addf %2, %4 : vector<8x16xf32>
    %cst_5 = arith.constant 0.000000e+00 : f32
    %6 = vector.broadcast %cst_5 : f32 to vector<8x16xf32>
    %7 = arith.maximumf %5, %6 : vector<8x16xf32>
    %c0_6 = arith.constant 0 : index
    %c0_7 = arith.constant 0 : index
    %8 = vector.load %arg4[%c0_6, %c0_7] : memref<8x16xf32, #tpu.memory_space<vmem>>, vector<8x16xf32>
    tpu.vector_store %arg4[%c0_6, %c0_7], %7 {strides = array<i32>} : memref<8x16xf32, #tpu.memory_space<vmem>>, vector<8x16xf32>,
    return
  }
  func.func @transform_0(%arg0: i32) -> (i32, i32) {
    %c0_i32 = arith.constant 0 : i32
    %c0_i32_0 = arith.constant 0 : i32
    return %arg0, %c0_i32 : i32, i32
  }
  func.func @transform_1(%arg0: i32) -> (i32, i32) {
    %c0_i32 = arith.constant 0 : i32
    %c0_i32_0 = arith.constant 0 : i32
    %c0_i32_1 = arith.constant 0 : i32
    return %c0_i32, %c0_i32_0 : i32, i32
  }
  func.func @transform_2(%arg0: i32) -> (i32, i32) {
    %c0_i32 = arith.constant 0 : i32
    %c0_i32_0 = arith.constant 0 : i32
    %c0_i32_1 = arith.constant 0 : i32
    return %c0_i32, %c0_i32_0 : i32, i32
  }
  func.func @transform_3(%arg0: i32) -> (i32, i32) {
    %c0_i32 = arith.constant 0 : i32
    %c0_i32_0 = arith.constant 0 : i32
    return %arg0, %c0_i32 : i32, i32
  }
}

module attributes {stable_mosaic.version = 11 : i64} {
  func.func @conv_bn_res_act_kernel(%arg0: i32, %arg1: memref<8x256xbf16, #tpu.memory_space<vmem>>, %arg2: memref<256x16xbf16, #tpu.memory_space<vmem>>, %arg3: memref<1x16xf32, #tpu.memory_space<vmem>>, %arg4: memref<8x16xf32, #tpu.memory_space<vmem>>, %arg5: memref<8x16xf32, #tpu.memory_space<vmem>>) attributes {dimension_semantics = [#tpu.dimension_semantics<parallel>], iteration_bounds = array<i64: 1>, scalar_prefetch = 0 : i64, scratch_operands = 0 : i64, tpu.core_type = #tpu.core_type<tc>, window_params = [{transform_indices = @transform_0, window_bounds = array<i64: 8, 256>}, {pipeline_mode = #tpu.pipeline_mode<synchronous>, transform_indices = @transform_1, window_bounds = array<i64: 256, 16>}, {pipeline_mode = #tpu.pipeline_mode<synchronous>, transform_indices = @transform_2, window_bounds = array<i64: 1, 16>}, {transform_indices = @transform_3, window_bounds = array<i64: 8, 16>}, {transform_indices = @transform_4, window_bounds = array<i64: 8, 16>}]} {
    %c0 = arith.constant 0 : index
    %c0_0 = arith.constant 0 : index
    %0 = vector.load %arg1[%c0, %c0_0] : memref<8x256xbf16, #tpu.memory_space<vmem>>, vector<8x256xbf16>
    %c0_1 = arith.constant 0 : index
    %c0_2 = arith.constant 0 : index
    %1 = vector.load %arg2[%c0_1, %c0_2] : memref<256x16xbf16, #tpu.memory_space<vmem>>, vector<256x16xbf16>
    %cst = arith.constant dense<0.000000e+00> : vector<8x16xf32>
    %2 = tpu.matmul %0, %1, %cst {dimension_numbers = #tpu.dot_dimension_numbers<[1], [0], [0], [1], [0, 0, 1, 1], [], []>} : vector<8x256xbf16>, vector<256x16xbf16>, vector<8x16xf32> -> vector<8x16xf32>
    %c0_3 = arith.constant 0 : index
    %c0_4 = arith.constant 0 : index
    %3 = vector.load %arg3[%c0_3, %c0_4] : memref<1x16xf32, #tpu.memory_space<vmem>>, vector<1x16xf32>
    %4 = vector.broadcast %3 : vector<1x16xf32> to vector<8x16xf32>
    %5 = arith.addf %2, %4 : vector<8x16xf32>
    %c0_5 = arith.constant 0 : index
    %c0_6 = arith.constant 0 : index
    %6 = vector.load %arg4[%c0_5, %c0_6] : memref<8x16xf32, #tpu.memory_space<vmem>>, vector<8x16xf32>
    %7 = arith.addf %5, %6 : vector<8x16xf32>
    %cst_7 = arith.constant 0.000000e+00 : f32
    %8 = vector.broadcast %cst_7 : f32 to vector<8x16xf32>
    %9 = arith.maximumf %7, %8 : vector<8x16xf32>
    %c0_8 = arith.constant 0 : index
    %c0_9 = arith.constant 0 : index
    %10 = vector.load %arg5[%c0_8, %c0_9] : memref<8x16xf32, #tpu.memory_space<vmem>>, vector<8x16xf32>
    tpu.vector_store %arg5[%c0_8, %c0_9], %9 {strides = array<i32>} : memref<8x16xf32, #tpu.memory_space<vmem>>, vector<8x16xf32>,
    return
  }
  func.func @transform_0(%arg0: i32) -> (i32, i32) {
    %c0_i32 = arith.constant 0 : i32
    %c0_i32_0 = arith.constant 0 : i32
    return %arg0, %c0_i32 : i32, i32
  }
  func.func @transform_1(%arg0: i32) -> (i32, i32) {
    %c0_i32 = arith.constant 0 : i32
    %c0_i32_0 = arith.constant 0 : i32
    %c0_i32_1 = arith.constant 0 : i32
    return %c0_i32, %c0_i32_0 : i32, i32
  }
  func.func @transform_2(%arg0: i32) -> (i32, i32) {
    %c0_i32 = arith.constant 0 : i32
    %c0_i32_0 = arith.constant 0 : i32
    %c0_i32_1 = arith.constant 0 : i32
    return %c0_i32, %c0_i32_0 : i32, i32
  }
  func.func @transform_3(%arg0: i32) -> (i32, i32) {
    %c0_i32 = arith.constant 0 : i32
    %c0_i32_0 = arith.constant 0 : i32
    return %arg0, %c0_i32 : i32, i32
  }
  func.func @transform_4(%arg0: i32) -> (i32, i32) {
    %c0_i32 = arith.constant 0 : i32
    %c0_i32_0 = arith.constant 0 : i32
    return %arg0, %c0_i32 : i32, i32
  }
}

</mosaic_0001>

<llo_original>
// kernel: _lambda_.7
$region0: #{_lambda_.7}
  #allocation0 [shape = 'u32[]', space=smem, size = 0x4, offset = 0x4, fixed_abs, tag = 'smem constant byte address 0x4 - core index']
  #allocation1 [shape = 'u32[144,128]{1,0:T(1,128)}', space=vmem, size = 0x12000, scoped, tag = 'internal scratch']
  %s0 = inlined_call_operand.vmem [shape: bf16[128,256], index: 0, kind: input, shape index: {}]
  %s1 = inlined_call_operand.vmem [shape: bf16[256,8], index: 1, kind: input, shape index: {}]
  %s2 = inlined_call_operand.vmem [shape: f32[1,8], index: 2, kind: input, shape index: {}]
  %s3 = inlined_call_operand.vmem [shape: f32[128,8], index: 3, kind: output, shape index: {}]
  %s4 = sld [smem:[#allocation0]]
  $region22: #{_lambda_.7} parent=0
    _
  %s6 = ssub.s32 1, %s4
  %s7 = scalar_select 0, %s6, %s4
  // Predicated region
  $region2: #{_lambda_.7} parent=0 // pred_check
    _
  $region3: #{_lambda_.7} parent=0 // pred_check_branch
    %9 = sbr.rel (0) target = $region5
  $region4: #{_lambda_.7} parent=0 // pred_region
    _
  $region5: #{_lambda_.7} parent=0 // pred_fallthru
    _
  // Predicated region
  $region6: #{_lambda_.7} parent=0 // pred_check
    _
  $region7: #{_lambda_.7} parent=0 // pred_check_branch
    %11 = sbr.rel (0) target = $region9
  $region8: #{_lambda_.7} parent=0 // pred_region
    _
  $region9: #{_lambda_.7} parent=0 // pred_fallthru
    _
  // Predicated region
  $region10: #{_lambda_.7} parent=0 // pred_check
    _
  $region11: #{_lambda_.7} parent=0 // pred_check_branch
    %13 = sbr.rel (0) target = $region13
  $region12: #{_lambda_.7} parent=0 // pred_region
    _
  $region13: #{_lambda_.7} parent=0 // pred_fallthru
    _
  %v15 = vld [vmem:[%s0] sm:$0xff]
  %v16 = vld [vmem:[%s0 + $0x8] sm:$0xff]
  %v17 = vld [vmem:[%s0 + $0x10] sm:$0xff]
  %v18 = vld [vmem:[%s0 + $0x18] sm:$0xff]
  %v19 = vld [vmem:[%s0 + $0x20] sm:$0xff]
  %v20 = vld [vmem:[%s0 + $0x28] sm:$0xff]
  %v21 = vld [vmem:[%s0 + $0x30] sm:$0xff]
  %v22 = vld [vmem:[%s0 + $0x38] sm:$0xff]
  %v23 = vld [vmem:[%s0 + $0x40] sm:$0xff]
  %v24 = vld [vmem:[%s0 + $0x48] sm:$0xff]
  %v25 = vld [vmem:[%s0 + $0x50] sm:$0xff]
  %v26 = vld [vmem:[%s0 + $0x58] sm:$0xff]
  %v27 = vld [vmem:[%s0 + $0x60] sm:$0xff]
  %v28 = vld [vmem:[%s0 + $0x68] sm:$0xff]
  %v29 = vld [vmem:[%s0 + $0x70] sm:$0xff]
  %v30 = vld [vmem:[%s0 + $0x78] sm:$0xff]
  %v31 = vld [vmem:[%s1] sm:$0xf]
  %v32 = vld [vmem:[%s1 + $0x4] sm:$0xf]
  %v33 = vld [vmem:[%s1 + $0x8] sm:$0xf]
  %v34 = vld [vmem:[%s1 + $0xc] sm:$0xf]
  %v35 = vld [vmem:[%s1 + $0x10] sm:$0xf]
  %v36 = vld [vmem:[%s1 + $0x14] sm:$0xf]
  %v37 = vld [vmem:[%s1 + $0x18] sm:$0xf]
  %v38 = vld [vmem:[%s1 + $0x1c] sm:$0xf]
  %v39 = vld [vmem:[%s1 + $0x20] sm:$0xf]
  %v40 = vld [vmem:[%s1 + $0x24] sm:$0xf]
  %v41 = vld [vmem:[%s1 + $0x28] sm:$0xf]
  %v42 = vld [vmem:[%s1 + $0x2c] sm:$0xf]
  %v43 = vld [vmem:[%s1 + $0x30] sm:$0xf]
  %v44 = vld [vmem:[%s1 + $0x34] sm:$0xf]
  %v45 = vld [vmem:[%s1 + $0x38] sm:$0xf]
  %v46 = vld [vmem:[%s1 + $0x3c] sm:$0xf]
  %v47 = vld [vmem:[%s1 + $0x40] sm:$0xf]
  %v48 = vld [vmem:[%s1 + $0x44] sm:$0xf]
  %v49 = vld [vmem:[%s1 + $0x48] sm:$0xf]
  %v50 = vld [vmem:[%s1 + $0x4c] sm:$0xf]
  %v51 = vld [vmem:[%s1 + $0x50] sm:$0xf]
  %v52 = vld [vmem:[%s1 + $0x54] sm:$0xf]
  %v53 = vld [vmem:[%s1 + $0x58] sm:$0xf]
  %v54 = vld [vmem:[%s1 + $0x5c] sm:$0xf]
  %v55 = vld [vmem:[%s1 + $0x60] sm:$0xf]
  %v56 = vld [vmem:[%s1 + $0x64] sm:$0xf]
  %v57 = vld [vmem:[%s1 + $0x68] sm:$0xf]
  %v58 = vld [vmem:[%s1 + $0x6c] sm:$0xf]
  %v59 = vld [vmem:[%s1 + $0x70] sm:$0xf]
  %v60 = vld [vmem:[%s1 + $0x74] sm:$0xf]
  %v61 = vld [vmem:[%s1 + $0x78] sm:$0xf]
  %v62 = vld [vmem:[%s1 + $0x7c] sm:$0xf]
  %v63 = vld [vmem:[%s2] sm:$0x1]
  %v65 = vlaneseq
  %v66 = vshrl.u32 %v65, 7
  %v67 = vsub.s32 0, %v66
  %v68 = vrot.slane %v63, %v67
  %v86 = vunpack.c.l.b16 %v15
  %v87 = vunpack.c.h.b16 %v15
  %v88 = vunpack.c.l.b16 %v16
  %v89 = vunpack.c.h.b16 %v16
  %v90 = vunpack.c.l.b16 %v17
  %v91 = vunpack.c.h.b16 %v17
  %v92 = vunpack.c.l.b16 %v18
  %v93 = vunpack.c.h.b16 %v18
  %v94 = vunpack.c.l.b16 %v19
  %v95 = vunpack.c.h.b16 %v19
  %v96 = vunpack.c.l.b16 %v20
  %v97 = vunpack.c.h.b16 %v20
  %v98 = vunpack.c.l.b16 %v21
  %v99 = vunpack.c.h.b16 %v21
  %v100 = vunpack.c.l.b16 %v22
  %v101 = vunpack.c.h.b16 %v22
  %v102 = vunpack.c.l.b16 %v23
  %v103 = vunpack.c.h.b16 %v23
  %v104 = vunpack.c.l.b16 %v24
  %v105 = vunpack.c.h.b16 %v24
  %v106 = vunpack.c.l.b16 %v25
  %v107 = vunpack.c.h.b16 %v25
  %v108 = vunpack.c.l.b16 %v26
  %v109 = vunpack.c.h.b16 %v26
  %v110 = vunpack.c.l.b16 %v27
  %v111 = vunpack.c.h.b16 %v27
  %v112 = vunpack.c.l.b16 %v28
  %v113 = vunpack.c.h.b16 %v28
  %v114 = vunpack.c.l.b16 %v29
  %v115 = vunpack.c.h.b16 %v29
  %v116 = vunpack.c.l.b16 %v30
  %v117 = vunpack.c.h.b16 %v30
  %v118 = vpack.c.b16 %v88, %v86
  %v119 = vpack.c.b16 %v89, %v87
  %v120 = vpack.c.b16 %v92, %v90
  %v121 = vpack.c.b16 %v93, %v91
  %v122 = vpack.c.b16 %v96, %v94
  %v123 = vpack.c.b16 %v97, %v95
  %v124 = vpack.c.b16 %v100, %v98
  %v125 = vpack.c.b16 %v101, %v99
  %v126 = vpack.c.b16 %v104, %v102
  %v127 = vpack.c.b16 %v105, %v103
  %v128 = vpack.c.b16 %v108, %v106
  %v129 = vpack.c.b16 %v109, %v107
  %v130 = vpack.c.b16 %v112, %v110
  %v131 = vpack.c.b16 %v113, %v111
  %v132 = vpack.c.b16 %v116, %v114
  %v133 = vpack.c.b16 %v117, %v115
  %v182 = vunpack.c.l.b16 %v31
  %v183 = vunpack.c.l.b16 %v32
  %v184 = vunpack.c.l.b16 %v33
  %v185 = vunpack.c.l.b16 %v34
  %v186 = vunpack.c.l.b16 %v35
  %v187 = vunpack.c.l.b16 %v36
  %v188 = vunpack.c.l.b16 %v37
  %v189 = vunpack.c.l.b16 %v38
  %v190 = vunpack.c.l.b16 %v39
  %v191 = vunpack.c.l.b16 %v40
  %v192 = vunpack.c.l.b16 %v41
  %v193 = vunpack.c.l.b16 %v42
  %v194 = vunpack.c.l.b16 %v43
  %v195 = vunpack.c.l.b16 %v44
  %v196 = vunpack.c.l.b16 %v45
  %v197 = vunpack.c.l.b16 %v46
  %v198 = vunpack.c.l.b16 %v47
  %v199 = vunpack.c.l.b16 %v48
  %v200 = vunpack.c.l.b16 %v49
  %v201 = vunpack.c.l.b16 %v50
  %v202 = vunpack.c.l.b16 %v51
  %v203 = vunpack.c.l.b16 %v52
  %v204 = vunpack.c.l.b16 %v53
  %v205 = vunpack.c.l.b16 %v54
  %v206 = vunpack.c.l.b16 %v55
  %v207 = vunpack.c.l.b16 %v56
  %v208 = vunpack.c.l.b16 %v57
  %v209 = vunpack.c.l.b16 %v58
  %v210 = vunpack.c.l.b16 %v59
  %v211 = vunpack.c.l.b16 %v60
  %v212 = vunpack.c.l.b16 %v61
  %v213 = vunpack.c.l.b16 %v62
  %v214 = vpack.c.b16 %v183, %v182
  %v215 = vpack.c.b16 %v185, %v184
  %v216 = vpack.c.b16 %v187, %v186
  %v217 = vpack.c.b16 %v189, %v188
  %v218 = vpack.c.b16 %v191, %v190
  %v219 = vpack.c.b16 %v193, %v192
  %v220 = vpack.c.b16 %v195, %v194
  %v221 = vpack.c.b16 %v197, %v196
  %v222 = vpack.c.b16 %v199, %v198
  %v223 = vpack.c.b16 %v201, %v200
  %v224 = vpack.c.b16 %v203, %v202
  %v225 = vpack.c.b16 %v205, %v204
  %v226 = vpack.c.b16 %v207, %v206
  %v227 = vpack.c.b16 %v209, %v208
  %v228 = vpack.c.b16 %v211, %v210
  %v229 = vpack.c.b16 %v213, %v212
  %246 = vmatprep.subr.bf16.mxu0 0
  %247 = vmatpush1.bf16.msra.mxu0 %v221
  %248 = vmatprep.subr.bf16.mxu0 0
  %249 = vmatpush1.bf16.msra.mxu0 %v220
  %250 = vmatprep.subr.bf16.mxu0 0
  %251 = vmatpush1.bf16.msra.mxu0 %v219
  %252 = vmatprep.subr.bf16.mxu0 0
  %253 = vmatpush1.bf16.msra.mxu0 %v218
  %254 = vmatprep.subr.bf16.mxu0 0
  %255 = vmatpush1.bf16.msra.mxu0 %v217
  %256 = vmatprep.subr.bf16.mxu0 0
  %257 = vmatpush1.bf16.msra.mxu0 %v216
  %258 = vmatprep.subr.bf16.mxu0 0
  %259 = vmatpush1.bf16.msra.mxu0 %v215
  %260 = vmatprep.subr.bf16.mxu0 0
  %261 = vmatpush1.bf16.msra.mxu0 %v214
  %262 = vmatprep.subr.bf16.mxu0 0
  %263 = vmatpush2.bf16.msra.mxu0 %v229
  %264 = vmatprep.subr.bf16.mxu0 0
  %265 = vmatpush2.bf16.msra.mxu0 %v228
  %266 = vmatprep.subr.bf16.mxu0 0
  %267 = vmatpush2.bf16.msra.mxu0 %v227
  %268 = vmatprep.subr.bf16.mxu0 0
  %269 = vmatpush2.bf16.msra.mxu0 %v226
  %270 = vmatprep.subr.bf16.mxu0 0
  %271 = vmatpush2.bf16.msra.mxu0 %v225
  %272 = vmatprep.subr.bf16.mxu0 0
  %273 = vmatpush2.bf16.msra.mxu0 %v224
  %274 = vmatprep.subr.bf16.mxu0 0
  %275 = vmatpush2.bf16.msra.mxu0 %v223
  %276 = vmatprep.subr.bf16.mxu0 0
  %277 = vmatpush2.bf16.msra.mxu0 %v222
  %278 = vmatprep.mubr.bf16.mxu0 %v119
  %279 = vmatmul.mubr.bf16.gmra.mxu0 %v118
  %v280 = vpop.f32.mrf.mxu0
  %v281 = vadd.f32 %v68, %v280
  %v282 = vpop.f32.mrf.mxu0
  %v283 = vpop.f32.mrf.mxu0
  %v284 = vadd.f32 %v68, %v283
  %v285 = vpop.f32.mrf.mxu0
  %286 = vmatprep.mubr.bf16.mxu0 %v121
  %287 = vmatmul.mubr.bf16.gmra.mxu0 %v120
  %v288 = vpop.f32.mrf.mxu0
  %v289 = vadd.f32 %v68, %v288
  %v290 = vpop.f32.mrf.mxu0
  %v291 = vpop.f32.mrf.mxu0
  %v292 = vadd.f32 %v68, %v291
  %v293 = vpop.f32.mrf.mxu0
  %294 = vmatprep.mubr.bf16.mxu0 %v123
  %295 = vmatmul.mubr.bf16.gmra.mxu0 %v122
  %v296 = vpop.f32.mrf.mxu0
  %v297 = vadd.f32 %v68, %v296
  %v298 = vpop.f32.mrf.mxu0
  %v299 = vpop.f32.mrf.mxu0
  %v300 = vadd.f32 %v68, %v299
  %v301 = vpop.f32.mrf.mxu0
  %302 = vmatprep.mubr.bf16.mxu0 %v125
  %303 = vmatmul.mubr.bf16.gmra.mxu0 %v124
  %v304 = vpop.f32.mrf.mxu0
  %v305 = vadd.f32 %v68, %v304
  %v306 = vpop.f32.mrf.mxu0
  %v307 = vpop.f32.mrf.mxu0
  %v308 = vadd.f32 %v68, %v307
  %v309 = vpop.f32.mrf.mxu0
  %310 = vmatprep.mubr.bf16.mxu0 %v127
  %311 = vmatmul.mubr.bf16.gmra.mxu0 %v126
  %v312 = vpop.f32.mrf.mxu0
  %v313 = vadd.f32 %v68, %v312
  %v314 = vpop.f32.mrf.mxu0
  %v315 = vpop.f32.mrf.mxu0
  %v316 = vadd.f32 %v68, %v315
  %v317 = vpop.f32.mrf.mxu0
  %318 = vmatprep.mubr.bf16.mxu0 %v129
  %319 = vmatmul.mubr.bf16.gmra.mxu0 %v128
  %v320 = vpop.f32.mrf.mxu0
  %v321 = vadd.f32 %v68, %v320
  %v322 = vpop.f32.mrf.mxu0
  %v323 = vpop.f32.mrf.mxu0
  %v324 = vadd.f32 %v68, %v323
  %v325 = vpop.f32.mrf.mxu0
  %326 = vmatprep.mubr.bf16.mxu0 %v131
  %327 = vmatmul.mubr.bf16.gmra.mxu0 %v130
  %v328 = vpop.f32.mrf.mxu0
  %v329 = vadd.f32 %v68, %v328
  %v330 = vpop.f32.mrf.mxu0
  %v331 = vpop.f32.mrf.mxu0
  %v332 = vadd.f32 %v68, %v331
  %v333 = vpop.f32.mrf.mxu0
  %334 = vmatprep.mubr.bf16.mxu0 %v133
  %335 = vmatmul.mubr.bf16.gmra.mxu0 %v132
  %v336 = vpop.f32.mrf.mxu0
  %v337 = vadd.f32 %v68, %v336
  %v338 = vpop.f32.mrf.mxu0
  %v339 = vpop.f32.mrf.mxu0
  %v340 = vadd.f32 %v68, %v339
  %v341 = vpop.f32.mrf.mxu0
  %342 = vdwg.mxu0
  %v343 = vmax.f32 %v281, 0.0
  %v344 = vmax.f32 %v284, 0.0
  %v345 = vmax.f32 %v289, 0.0
  %v346 = vmax.f32 %v292, 0.0
  %v347 = vmax.f32 %v297, 0.0
  %v348 = vmax.f32 %v300, 0.0
  %v349 = vmax.f32 %v305, 0.0
  %v350 = vmax.f32 %v308, 0.0
  %v351 = vmax.f32 %v313, 0.0
  %v352 = vmax.f32 %v316, 0.0
  %v353 = vmax.f32 %v321, 0.0
  %v354 = vmax.f32 %v324, 0.0
  %v355 = vmax.f32 %v329, 0.0
  %v356 = vmax.f32 %v332, 0.0
  %v357 = vmax.f32 %v337, 0.0
  %v358 = vmax.f32 %v340, 0.0
  %vm359 = vcmask 64512
  %360 = vst.msk [vmem:[%s3] sm:$0xff] %vm359, %v343
  %361 = vst.msk [vmem:[%s3 + $0x8] sm:$0xff] %vm359, %v344
  %362 = vst.msk [vmem:[%s3 + $0x10] sm:$0xff] %vm359, %v345
  %363 = vst.msk [vmem:[%s3 + $0x18] sm:$0xff] %vm359, %v346
  %364 = vst.msk [vmem:[%s3 + $0x20] sm:$0xff] %vm359, %v347
  %365 = vst.msk [vmem:[%s3 + $0x28] sm:$0xff] %vm359, %v348
  %366 = vst.msk [vmem:[%s3 + $0x30] sm:$0xff] %vm359, %v349
  %367 = vst.msk [vmem:[%s3 + $0x38] sm:$0xff] %vm359, %v350
  %368 = vst.msk [vmem:[%s3 + $0x40] sm:$0xff] %vm359, %v351
  %369 = vst.msk [vmem:[%s3 + $0x48] sm:$0xff] %vm359, %v352
  %370 = vst.msk [vmem:[%s3 + $0x50] sm:$0xff] %vm359, %v353
  %371 = vst.msk [vmem:[%s3 + $0x58] sm:$0xff] %vm359, %v354
  %372 = vst.msk [vmem:[%s3 + $0x60] sm:$0xff] %vm359, %v355
  %373 = vst.msk [vmem:[%s3 + $0x68] sm:$0xff] %vm359, %v356
  %374 = vst.msk [vmem:[%s3 + $0x70] sm:$0xff] %vm359, %v357
  %375 = vst.msk [vmem:[%s3 + $0x78] sm:$0xff] %vm359, %v358
  // Predicated region
  $region14: #{_lambda_.7} parent=0 // pred_check
    _
  $region15: #{_lambda_.7} parent=0 // pred_check_branch
    %377 = sbr.rel (0) target = $region17
  $region16: #{_lambda_.7} parent=0 // pred_region
    _
  $region17: #{_lambda_.7} parent=0 // pred_fallthru
    _
  // Predicated region
  $region18: #{_lambda_.7} parent=0 // pred_check
    _
  $region19: #{_lambda_.7} parent=0 // pred_check_branch
    %379 = sbr.rel (0) target = $region21
  $region20: #{_lambda_.7} parent=0 // pred_region
    _
  $region21: #{_lambda_.7} parent=0 // pred_fallthru
    _

// kernel: _lambda_.8
$region0: #{_lambda_.8}
  #allocation0 [shape = 'u32[]', space=smem, size = 0x4, offset = 0x4, fixed_abs, tag = 'smem constant byte address 0x4 - core index']
  #allocation1 [shape = 'u32[144,128]{1,0:T(1,128)}', space=vmem, size = 0x12000, scoped, tag = 'internal scratch']
  %s0 = inlined_call_operand.vmem [shape: f32[9,32,8], index: 0, kind: input, shape index: {}]
  %s1 = inlined_call_operand.vmem [shape: f32[32,8], index: 1, kind: output, shape index: {}]
  %s2 = sld [smem:[#allocation0]]
  $region14: #{_lambda_.8} parent=0
    _
  %s4 = ssub.s32 1, %s2
  %s5 = scalar_select 0, %s4, %s2
  // Predicated region
  $region2: #{_lambda_.8} parent=0 // pred_check
    _
  $region3: #{_lambda_.8} parent=0 // pred_check_branch
    %7 = sbr.rel (0) target = $region5
  $region4: #{_lambda_.8} parent=0 // pred_region
    _
  $region5: #{_lambda_.8} parent=0 // pred_fallthru
    _
  %v8 = vld [vmem:[%s0] sm:$0xff]
  %v9 = vld [vmem:[%s0 + $0x8] sm:$0xff]
  %v10 = vld [vmem:[%s0 + $0x10] sm:$0xff]
  %v11 = vld [vmem:[%s0 + $0x18] sm:$0xff]
  %s12 = scalar_lea.vmem %s0, 32
  %v13 = vld [vmem:[%s12] sm:$0xff]
  %v14 = vld [vmem:[%s12 + $0x8] sm:$0xff]
  %v15 = vld [vmem:[%s12 + $0x10] sm:$0xff]
  %v16 = vld [vmem:[%s12 + $0x18] sm:$0xff]
  %v17 = vmax.f32 %v8, %v13
  %v18 = vmax.f32 %v9, %v14
  %v19 = vmax.f32 %v10, %v15
  %v20 = vmax.f32 %v11, %v16
  %s21 = scalar_lea.vmem %s0, 64
  %v22 = vld [vmem:[%s21] sm:$0xff]
  %v23 = vld [vmem:[%s21 + $0x8] sm:$0xff]
  %v24 = vld [vmem:[%s21 + $0x10] sm:$0xff]
  %v25 = vld [vmem:[%s21 + $0x18] sm:$0xff]
  %v26 = vmax.f32 %v17, %v22
  %v27 = vmax.f32 %v18, %v23
  %v28 = vmax.f32 %v19, %v24
  %v29 = vmax.f32 %v20, %v25
  %s30 = scalar_lea.vmem %s0, 96
  %v31 = vld [vmem:[%s30] sm:$0xff]
  %v32 = vld [vmem:[%s30 + $0x8] sm:$0xff]
  %v33 = vld [vmem:[%s30 + $0x10] sm:$0xff]
  %v34 = vld [vmem:[%s30 + $0x18] sm:$0xff]
  %v35 = vmax.f32 %v26, %v31
  %v36 = vmax.f32 %v27, %v32
  %v37 = vmax.f32 %v28, %v33
  %v38 = vmax.f32 %v29, %v34
  %s39 = scalar_lea.vmem %s0, 128
  %v40 = vld [vmem:[%s39] sm:$0xff]
  %v41 = vld [vmem:[%s39 + $0x8] sm:$0xff]
  %v42 = vld [vmem:[%s39 + $0x10] sm:$0xff]
  %v43 = vld [vmem:[%s39 + $0x18] sm:$0xff]
  %v44 = vmax.f32 %v35, %v40
  %v45 = vmax.f32 %v36, %v41
  %v46 = vmax.f32 %v37, %v42
  %v47 = vmax.f32 %v38, %v43
  %s48 = scalar_lea.vmem %s0, 160
  %v49 = vld [vmem:[%s48] sm:$0xff]
  %v50 = vld [vmem:[%s48 + $0x8] sm:$0xff]
  %v51 = vld [vmem:[%s48 + $0x10] sm:$0xff]
  %v52 = vld [vmem:[%s48 + $0x18] sm:$0xff]
  %v53 = vmax.f32 %v44, %v49
  %v54 = vmax.f32 %v45, %v50
  %v55 = vmax.f32 %v46, %v51
  %v56 = vmax.f32 %v47, %v52
  %s57 = scalar_lea.vmem %s0, 192
  %v58 = vld [vmem:[%s57] sm:$0xff]
  %v59 = vld [vmem:[%s57 + $0x8] sm:$0xff]
  %v60 = vld [vmem:[%s57 + $0x10] sm:$0xff]
  %v61 = vld [vmem:[%s57 + $0x18] sm:$0xff]
  %v62 = vmax.f32 %v53, %v58
  %v63 = vmax.f32 %v54, %v59
  %v64 = vmax.f32 %v55, %v60
  %v65 = vmax.f32 %v56, %v61
  %s66 = scalar_lea.vmem %s0, 224
  %v67 = vld [vmem:[%s66] sm:$0xff]
  %v68 = vld [vmem:[%s66 + $0x8] sm:$0xff]
  %v69 = vld [vmem:[%s66 + $0x10] sm:$0xff]
  %v70 = vld [vmem:[%s66 + $0x18] sm:$0xff]
  %v71 = vmax.f32 %v62, %v67
  %v72 = vmax.f32 %v63, %v68
  %v73 = vmax.f32 %v64, %v69
  %v74 = vmax.f32 %v65, %v70
  %s75 = scalar_lea.vmem %s0, 256
  %v76 = vld [vmem:[%s75] sm:$0xff]
  %v77 = vld [vmem:[%s75 + $0x8] sm:$0xff]
  %v78 = vld [vmem:[%s75 + $0x10] sm:$0xff]
  %v79 = vld [vmem:[%s75 + $0x18] sm:$0xff]
  %v80 = vmax.f32 %v71, %v76
  %v81 = vmax.f32 %v72, %v77
  %v82 = vmax.f32 %v73, %v78
  %v83 = vmax.f32 %v74, %v79
  %vm84 = vcmask 64512
  %85 = vst.msk [vmem:[%s1] sm:$0xff] %vm84, %v80
  %86 = vst.msk [vmem:[%s1 + $0x8] sm:$0xff] %vm84, %v81
  %87 = vst.msk [vmem:[%s1 + $0x10] sm:$0xff] %vm84, %v82
  %88 = vst.msk [vmem:[%s1 + $0x18] sm:$0xff] %vm84, %v83
  // Predicated region
  $region6: #{_lambda_.8} parent=0 // pred_check
    _
  $region7: #{_lambda_.8} parent=0 // pred_check_branch
    %90 = sbr.rel (0) target = $region9
  $region8: #{_lambda_.8} parent=0 // pred_region
    _
  $region9: #{_lambda_.8} parent=0 // pred_fallthru
    _
  // Predicated region
  $region10: #{_lambda_.8} parent=0 // pred_check
    _
  $region11: #{_lambda_.8} parent=0 // pred_check_branch
    %92 = sbr.rel (0) target = $region13
  $region12: #{_lambda_.8} parent=0 // pred_region
    _
  $region13: #{_lambda_.8} parent=0 // pred_fallthru
    _

// kernel: _lambda_.9
$region0: #{_lambda_.9}
  #allocation0 [shape = 'u32[]', space=smem, size = 0x4, offset = 0x4, fixed_abs, tag = 'smem constant byte address 0x4 - core index']
  #allocation1 [shape = 'u32[144,128]{1,0:T(1,128)}', space=vmem, size = 0x12000, scoped, tag = 'internal scratch']
  %s0 = inlined_call_operand.vmem [shape: bf16[32,128], index: 0, kind: input, shape index: {}]
  %s1 = inlined_call_operand.vmem [shape: bf16[128,8], index: 1, kind: input, shape index: {}]
  %s2 = inlined_call_operand.vmem [shape: f32[1,8], index: 2, kind: input, shape index: {}]
  %s3 = inlined_call_operand.vmem [shape: f32[32,8], index: 3, kind: output, shape index: {}]
  %s4 = sld [smem:[#allocation0]]
  $region22: #{_lambda_.9} parent=0
    _
  %s6 = ssub.s32 1, %s4
  %s7 = scalar_select 0, %s6, %s4
  // Predicated region
  $region2: #{_lambda_.9} parent=0 // pred_check
    _
  $region3: #{_lambda_.9} parent=0 // pred_check_branch
    %9 = sbr.rel (0) target = $region5
  $region4: #{_lambda_.9} parent=0 // pred_region
    _
  $region5: #{_lambda_.9} parent=0 // pred_fallthru
    _
  // Predicated region
  $region6: #{_lambda_.9} parent=0 // pred_check
    _
  $region7: #{_lambda_.9} parent=0 // pred_check_branch
    %11 = sbr.rel (0) target = $region9
  $region8: #{_lambda_.9} parent=0 // pred_region
    _
  $region9: #{_lambda_.9} parent=0 // pred_fallthru
    _
  // Predicated region
  $region10: #{_lambda_.9} parent=0 // pred_check
    _
  $region11: #{_lambda_.9} parent=0 // pred_check_branch
    %13 = sbr.rel (0) target = $region13
  $region12: #{_lambda_.9} parent=0 // pred_region
    _
  $region13: #{_lambda_.9} parent=0 // pred_fallthru
    _
  %v15 = vld [vmem:[%s0] sm:$0xf]
  %v16 = vld [vmem:[%s0 + $0x4] sm:$0xf]
  %v17 = vld [vmem:[%s0 + $0x8] sm:$0xf]
  %v18 = vld [vmem:[%s0 + $0xc] sm:$0xf]
  %v19 = vld [vmem:[%s1] sm:$0xf]
  %v20 = vld [vmem:[%s1 + $0x4] sm:$0xf]
  %v21 = vld [vmem:[%s1 + $0x8] sm:$0xf]
  %v22 = vld [vmem:[%s1 + $0xc] sm:$0xf]
  %v23 = vld [vmem:[%s1 + $0x10] sm:$0xf]
  %v24 = vld [vmem:[%s1 + $0x14] sm:$0xf]
  %v25 = vld [vmem:[%s1 + $0x18] sm:$0xf]
  %v26 = vld [vmem:[%s1 + $0x1c] sm:$0xf]
  %v27 = vld [vmem:[%s1 + $0x20] sm:$0xf]
  %v28 = vld [vmem:[%s1 + $0x24] sm:$0xf]
  %v29 = vld [vmem:[%s1 + $0x28] sm:$0xf]
  %v30 = vld [vmem:[%s1 + $0x2c] sm:$0xf]
  %v31 = vld [vmem:[%s1 + $0x30] sm:$0xf]
  %v32 = vld [vmem:[%s1 + $0x34] sm:$0xf]
  %v33 = vld [vmem:[%s1 + $0x38] sm:$0xf]
  %v34 = vld [vmem:[%s1 + $0x3c] sm:$0xf]
  %v35 = vld [vmem:[%s2] sm:$0x1]
  %v37 = vlaneseq
  %v38 = vshrl.u32 %v37, 7
  %v39 = vsub.s32 0, %v38
  %v40 = vrot.slane %v35, %v39
  %v46 = vunpack.c.l.b16 %v15
  %v47 = vunpack.c.l.b16 %v16
  %v48 = vunpack.c.l.b16 %v17
  %v49 = vunpack.c.l.b16 %v18
  %v50 = vpack.c.b16 %v47, %v46
  %v51 = vpack.c.b16 %v49, %v48
  %v70 = vunpack.c.l.b16 %v19
  %v71 = vunpack.c.l.b16 %v20
  %v72 = vunpack.c.l.b16 %v21
  %v73 = vunpack.c.l.b16 %v22
  %v74 = vunpack.c.l.b16 %v23
  %v75 = vunpack.c.l.b16 %v24
  %v76 = vunpack.c.l.b16 %v25
  %v77 = vunpack.c.l.b16 %v26
  %v78 = vunpack.c.l.b16 %v27
  %v79 = vunpack.c.l.b16 %v28
  %v80 = vunpack.c.l.b16 %v29
  %v81 = vunpack.c.l.b16 %v30
  %v82 = vunpack.c.l.b16 %v31
  %v83 = vunpack.c.l.b16 %v32
  %v84 = vunpack.c.l.b16 %v33
  %v85 = vunpack.c.l.b16 %v34
  %v86 = vpack.c.b16 %v71, %v70
  %v87 = vpack.c.b16 %v73, %v72
  %v88 = vpack.c.b16 %v75, %v74
  %v89 = vpack.c.b16 %v77, %v76
  %v90 = vpack.c.b16 %v79, %v78
  %v91 = vpack.c.b16 %v81, %v80
  %v92 = vpack.c.b16 %v83, %v82
  %v93 = vpack.c.b16 %v85, %v84
  %102 = vmatprep.subr.bf16.mxu0 0
  %103 = vmatpush1.bf16.msra.mxu0 %v93
  %104 = vmatprep.subr.bf16.mxu0 0
  %105 = vmatpush1.bf16.msra.mxu0 %v92
  %106 = vmatprep.subr.bf16.mxu0 0
  %107 = vmatpush1.bf16.msra.mxu0 %v91
  %108 = vmatprep.subr.bf16.mxu0 0
  %109 = vmatpush1.bf16.msra.mxu0 %v90
  %110 = vmatprep.subr.bf16.mxu0 0
  %111 = vmatpush1.bf16.msra.mxu0 %v89
  %112 = vmatprep.subr.bf16.mxu0 0
  %113 = vmatpush1.bf16.msra.mxu0 %v88
  %114 = vmatprep.subr.bf16.mxu0 0
  %115 = vmatpush1.bf16.msra.mxu0 %v87
  %116 = vmatprep.subr.bf16.mxu0 0
  %117 = vmatpush1.bf16.msra.mxu0 %v86
  %118 = vmatprep.subr.bf16.mxu0 0
  %119 = vmatpush2.bf16.msra.mxu0 0
  %120 = vmatprep.subr.bf16.mxu0 0
  %121 = vmatpush2.bf16.msra.mxu0 0
  %122 = vmatprep.subr.bf16.mxu0 0
  %123 = vmatpush2.bf16.msra.mxu0 0
  %124 = vmatprep.subr.bf16.mxu0 0
  %125 = vmatpush2.bf16.msra.mxu0 0
  %126 = vmatprep.subr.bf16.mxu0 0
  %127 = vmatpush2.bf16.msra.mxu0 0
  %128 = vmatprep.subr.bf16.mxu0 0
  %129 = vmatpush2.bf16.msra.mxu0 0
  %130 = vmatprep.subr.bf16.mxu0 0
  %131 = vmatpush2.bf16.msra.mxu0 0
  %132 = vmatprep.subr.bf16.mxu0 0
  %133 = vmatpush2.bf16.msra.mxu0 0
  %134 = vmatprep.mubr.bf16.mxu0 0
  %135 = vmatmul.mubr.bf16.gmra.mxu0 %v50
  %v136 = vpop.f32.mrf.mxu0
  %v137 = vadd.f32 %v40, %v136
  %v138 = vpop.f32.mrf.mxu0
  %v139 = vpop.f32.mrf.mxu0
  %v140 = vadd.f32 %v40, %v139
  %v141 = vpop.f32.mrf.mxu0
  %142 = vmatprep.mubr.bf16.mxu0 0
  %143 = vmatmul.mubr.bf16.gmra.mxu0 %v51
  %v144 = vpop.f32.mrf.mxu0
  %v145 = vadd.f32 %v40, %v144
  %v146 = vpop.f32.mrf.mxu0
  %v147 = vpop.f32.mrf.mxu0
  %v148 = vadd.f32 %v40, %v147
  %v149 = vpop.f32.mrf.mxu0
  %150 = vdwg.mxu0
  %v151 = vmax.f32 %v137, 0.0
  %v152 = vmax.f32 %v140, 0.0
  %v153 = vmax.f32 %v145, 0.0
  %v154 = vmax.f32 %v148, 0.0
  %vm155 = vcmask 64512
  %156 = vst.msk [vmem:[%s3] sm:$0xff] %vm155, %v151
  %157 = vst.msk [vmem:[%s3 + $0x8] sm:$0xff] %vm155, %v152
  %158 = vst.msk [vmem:[%s3 + $0x10] sm:$0xff] %vm155, %v153
  %159 = vst.msk [vmem:[%s3 + $0x18] sm:$0xff] %vm155, %v154
  // Predicated region
  $region14: #{_lambda_.9} parent=0 // pred_check
    _
  $region15: #{_lambda_.9} parent=0 // pred_check_branch
    %161 = sbr.rel (0) target = $region17
  $region16: #{_lambda_.9} parent=0 // pred_region
    _
  $region17: #{_lambda_.9} parent=0 // pred_fallthru
    _
  // Predicated region
  $region18: #{_lambda_.9} parent=0 // pred_check
    _
  $region19: #{_lambda_.9} parent=0 // pred_check_branch
    %163 = sbr.rel (0) target = $region21
  $region20: #{_lambda_.9} parent=0 // pred_region
    _
  $region21: #{_lambda_.9} parent=0 // pred_fallthru
    _

// kernel: _lambda_.10
$region0: #{_lambda_.10}
  #allocation0 [shape = 'u32[]', space=smem, size = 0x4, offset = 0x4, fixed_abs, tag = 'smem constant byte address 0x4 - core index']
  #allocation1 [shape = 'u32[144,128]{1,0:T(1,128)}', space=vmem, size = 0x12000, scoped, tag = 'internal scratch']
  %s0 = inlined_call_operand.vmem [shape: bf16[32,128], index: 0, kind: input, shape index: {}]
  %s1 = inlined_call_operand.vmem [shape: bf16[128,8], index: 1, kind: input, shape index: {}]
  %s2 = inlined_call_operand.vmem [shape: f32[1,8], index: 2, kind: input, shape index: {}]
  %s3 = inlined_call_operand.vmem [shape: f32[32,8], index: 3, kind: input, shape index: {}]
  %s4 = inlined_call_operand.vmem [shape: f32[32,8], index: 4, kind: output, shape index: {}]
  %s5 = sld [smem:[#allocation0]]
  $region26: #{_lambda_.10} parent=0
    _
  %s7 = ssub.s32 1, %s5
  %s8 = scalar_select 0, %s7, %s5
  // Predicated region
  $region2: #{_lambda_.10} parent=0 // pred_check
    _
  $region3: #{_lambda_.10} parent=0 // pred_check_branch
    %10 = sbr.rel (0) target = $region5
  $region4: #{_lambda_.10} parent=0 // pred_region
    _
  $region5: #{_lambda_.10} parent=0 // pred_fallthru
    _
  // Predicated region
  $region6: #{_lambda_.10} parent=0 // pred_check
    _
  $region7: #{_lambda_.10} parent=0 // pred_check_branch
    %12 = sbr.rel (0) target = $region9
  $region8: #{_lambda_.10} parent=0 // pred_region
    _
  $region9: #{_lambda_.10} parent=0 // pred_fallthru
    _
  // Predicated region
  $region10: #{_lambda_.10} parent=0 // pred_check
    _
  $region11: #{_lambda_.10} parent=0 // pred_check_branch
    %14 = sbr.rel (0) target = $region13
  $region12: #{_lambda_.10} parent=0 // pred_region
    _
  $region13: #{_lambda_.10} parent=0 // pred_fallthru
    _
  // Predicated region
  $region14: #{_lambda_.10} parent=0 // pred_check
    _
  $region15: #{_lambda_.10} parent=0 // pred_check_branch
    %16 = sbr.rel (0) target = $region17
  $region16: #{_lambda_.10} parent=0 // pred_region
    _
  $region17: #{_lambda_.10} parent=0 // pred_fallthru
    _
  %v18 = vld [vmem:[%s0] sm:$0xf]
  %v19 = vld [vmem:[%s0 + $0x4] sm:$0xf]
  %v20 = vld [vmem:[%s0 + $0x8] sm:$0xf]
  %v21 = vld [vmem:[%s0 + $0xc] sm:$0xf]
  %v22 = vld [vmem:[%s1] sm:$0xf]
  %v23 = vld [vmem:[%s1 + $0x4] sm:$0xf]
  %v24 = vld [vmem:[%s1 + $0x8] sm:$0xf]
  %v25 = vld [vmem:[%s1 + $0xc] sm:$0xf]
  %v26 = vld [vmem:[%s1 + $0x10] sm:$0xf]
  %v27 = vld [vmem:[%s1 + $0x14] sm:$0xf]
  %v28 = vld [vmem:[%s1 + $0x18] sm:$0xf]
  %v29 = vld [vmem:[%s1 + $0x1c] sm:$0xf]
  %v30 = vld [vmem:[%s1 + $0x20] sm:$0xf]
  %v31 = vld [vmem:[%s1 + $0x24] sm:$0xf]
  %v32 = vld [vmem:[%s1 + $0x28] sm:$0xf]
  %v33 = vld [vmem:[%s1 + $0x2c] sm:$0xf]
  %v34 = vld [vmem:[%s1 + $0x30] sm:$0xf]
  %v35 = vld [vmem:[%s1 + $0x34] sm:$0xf]
  %v36 = vld [vmem:[%s1 + $0x38] sm:$0xf]
  %v37 = vld [vmem:[%s1 + $0x3c] sm:$0xf]
  %v38 = vld [vmem:[%s2] sm:$0x1]
  %v40 = vlaneseq
  %v41 = vshrl.u32 %v40, 7
  %v42 = vsub.s32 0, %v41
  %v43 = vrot.slane %v38, %v42
  %v49 = vunpack.c.l.b16 %v18
  %v50 = vunpack.c.l.b16 %v19
  %v51 = vunpack.c.l.b16 %v20
  %v52 = vunpack.c.l.b16 %v21
  %v53 = vpack.c.b16 %v50, %v49
  %v54 = vpack.c.b16 %v52, %v51
  %v73 = vunpack.c.l.b16 %v22
  %v74 = vunpack.c.l.b16 %v23
  %v75 = vunpack.c.l.b16 %v24
  %v76 = vunpack.c.l.b16 %v25
  %v77 = vunpack.c.l.b16 %v26
  %v78 = vunpack.c.l.b16 %v27
  %v79 = vunpack.c.l.b16 %v28
  %v80 = vunpack.c.l.b16 %v29
  %v81 = vunpack.c.l.b16 %v30
  %v82 = vunpack.c.l.b16 %v31
  %v83 = vunpack.c.l.b16 %v32
  %v84 = vunpack.c.l.b16 %v33
  %v85 = vunpack.c.l.b16 %v34
  %v86 = vunpack.c.l.b16 %v35
  %v87 = vunpack.c.l.b16 %v36
  %v88 = vunpack.c.l.b16 %v37
  %v89 = vpack.c.b16 %v74, %v73
  %v90 = vpack.c.b16 %v76, %v75
  %v91 = vpack.c.b16 %v78, %v77
  %v92 = vpack.c.b16 %v80, %v79
  %v93 = vpack.c.b16 %v82, %v81
  %v94 = vpack.c.b16 %v84, %v83
  %v95 = vpack.c.b16 %v86, %v85
  %v96 = vpack.c.b16 %v88, %v87
  %105 = vmatprep.subr.bf16.mxu0 0
  %106 = vmatpush1.bf16.msra.mxu0 %v96
  %107 = vmatprep.subr.bf16.mxu0 0
  %108 = vmatpush1.bf16.msra.mxu0 %v95
  %109 = vmatprep.subr.bf16.mxu0 0
  %110 = vmatpush1.bf16.msra.mxu0 %v94
  %111 = vmatprep.subr.bf16.mxu0 0
  %112 = vmatpush1.bf16.msra.mxu0 %v93
  %113 = vmatprep.subr.bf16.mxu0 0
  %114 = vmatpush1.bf16.msra.mxu0 %v92
  %115 = vmatprep.subr.bf16.mxu0 0
  %116 = vmatpush1.bf16.msra.mxu0 %v91
  %117 = vmatprep.subr.bf16.mxu0 0
  %118 = vmatpush1.bf16.msra.mxu0 %v90
  %119 = vmatprep.subr.bf16.mxu0 0
  %120 = vmatpush1.bf16.msra.mxu0 %v89
  %121 = vmatprep.subr.bf16.mxu0 0
  %122 = vmatpush2.bf16.msra.mxu0 0
  %123 = vmatprep.subr.bf16.mxu0 0
  %124 = vmatpush2.bf16.msra.mxu0 0
  %125 = vmatprep.subr.bf16.mxu0 0
  %126 = vmatpush2.bf16.msra.mxu0 0
  %127 = vmatprep.subr.bf16.mxu0 0
  %128 = vmatpush2.bf16.msra.mxu0 0
  %129 = vmatprep.subr.bf16.mxu0 0
  %130 = vmatpush2.bf16.msra.mxu0 0
  %131 = vmatprep.subr.bf16.mxu0 0
  %132 = vmatpush2.bf16.msra.mxu0 0
  %133 = vmatprep.subr.bf16.mxu0 0
  %134 = vmatpush2.bf16.msra.mxu0 0
  %135 = vmatprep.subr.bf16.mxu0 0
  %136 = vmatpush2.bf16.msra.mxu0 0
  %137 = vmatprep.mubr.bf16.mxu0 0
  %138 = vmatmul.mubr.bf16.gmra.mxu0 %v53
  %v139 = vpop.f32.mrf.mxu0
  %v140 = vadd.f32 %v43, %v139
  %v141 = vpop.f32.mrf.mxu0
  %v142 = vpop.f32.mrf.mxu0
  %v143 = vadd.f32 %v43, %v142
  %v144 = vpop.f32.mrf.mxu0
  %145 = vmatprep.mubr.bf16.mxu0 0
  %146 = vmatmul.mubr.bf16.gmra.mxu0 %v54
  %v147 = vpop.f32.mrf.mxu0
  %v148 = vadd.f32 %v43, %v147
  %v149 = vpop.f32.mrf.mxu0
  %v150 = vpop.f32.mrf.mxu0
  %v151 = vadd.f32 %v43, %v150
  %v152 = vpop.f32.mrf.mxu0
  %153 = vdwg.mxu0
  %v154 = vld [vmem:[%s3] sm:$0xff]
  %v155 = vld [vmem:[%s3 + $0x8] sm:$0xff]
  %v156 = vld [vmem:[%s3 + $0x10] sm:$0xff]
  %v157 = vld [vmem:[%s3 + $0x18] sm:$0xff]
  %v158 = vadd.f32 %v140, %v154
  %v159 = vadd.f32 %v143, %v155
  %v160 = vadd.f32 %v148, %v156
  %v161 = vadd.f32 %v151, %v157
  %v162 = vmax.f32 %v158, 0.0
  %v163 = vmax.f32 %v159, 0.0
  %v164 = vmax.f32 %v160, 0.0
  %v165 = vmax.f32 %v161, 0.0
  %vm166 = vcmask 64512
  %167 = vst.msk [vmem:[%s4] sm:$0xff] %vm166, %v162
  %168 = vst.msk [vmem:[%s4 + $0x8] sm:$0xff] %vm166, %v163
  %169 = vst.msk [vmem:[%s4 + $0x10] sm:$0xff] %vm166, %v164
  %170 = vst.msk [vmem:[%s4 + $0x18] sm:$0xff] %vm166, %v165
  // Predicated region
  $region18: #{_lambda_.10} parent=0 // pred_check
    _
  $region19: #{_lambda_.10} parent=0 // pred_check_branch
    %172 = sbr.rel (0) target = $region21
  $region20: #{_lambda_.10} parent=0 // pred_region
    _
  $region21: #{_lambda_.10} parent=0 // pred_fallthru
    _
  // Predicated region
  $region22: #{_lambda_.10} parent=0 // pred_check
    _
  $region23: #{_lambda_.10} parent=0 // pred_check_branch
    %174 = sbr.rel (0) target = $region25
  $region24: #{_lambda_.10} parent=0 // pred_region
    _
  $region25: #{_lambda_.10} parent=0 // pred_fallthru
    _

// kernel: _lambda_.11
$region0: #{_lambda_.11}
  #allocation0 [shape = 'u32[]', space=smem, size = 0x4, offset = 0x4, fixed_abs, tag = 'smem constant byte address 0x4 - core index']
  #allocation1 [shape = 'u32[144,128]{1,0:T(1,128)}', space=vmem, size = 0x12000, scoped, tag = 'internal scratch']
  %s0 = inlined_call_operand.vmem [shape: bf16[8,128], index: 0, kind: input, shape index: {}]
  %s1 = inlined_call_operand.vmem [shape: bf16[128,16], index: 1, kind: input, shape index: {}]
  %s2 = inlined_call_operand.vmem [shape: f32[1,16], index: 2, kind: input, shape index: {}]
  %s3 = inlined_call_operand.vmem [shape: f32[8,16], index: 3, kind: output, shape index: {}]
  %s4 = sld [smem:[#allocation0]]
  $region22: #{_lambda_.11} parent=0
    _
  %s6 = ssub.s32 1, %s4
  %s7 = scalar_select 0, %s6, %s4
  // Predicated region
  $region2: #{_lambda_.11} parent=0 // pred_check
    _
  $region3: #{_lambda_.11} parent=0 // pred_check_branch
    %9 = sbr.rel (0) target = $region5
  $region4: #{_lambda_.11} parent=0 // pred_region
    _
  $region5: #{_lambda_.11} parent=0 // pred_fallthru
    _
  // Predicated region
  $region6: #{_lambda_.11} parent=0 // pred_check
    _
  $region7: #{_lambda_.11} parent=0 // pred_check_branch
    %11 = sbr.rel (0) target = $region9
  $region8: #{_lambda_.11} parent=0 // pred_region
    _
  $region9: #{_lambda_.11} parent=0 // pred_fallthru
    _
  // Predicated region
  $region10: #{_lambda_.11} parent=0 // pred_check
    _
  $region11: #{_lambda_.11} parent=0 // pred_check_branch
    %13 = sbr.rel (0) target = $region13
  $region12: #{_lambda_.11} parent=0 // pred_region
    _
  $region13: #{_lambda_.11} parent=0 // pred_fallthru
    _
  %v15 = vld [vmem:[%s0] sm:$0xf]
  %v16 = vld [vmem:[%s1] sm:$0xf]
  %v17 = vld [vmem:[%s1 + $0x4] sm:$0xf]
  %v18 = vld [vmem:[%s1 + $0x8] sm:$0xf]
  %v19 = vld [vmem:[%s1 + $0xc] sm:$0xf]
  %v20 = vld [vmem:[%s1 + $0x10] sm:$0xf]
  %v21 = vld [vmem:[%s1 + $0x14] sm:$0xf]
  %v22 = vld [vmem:[%s1 + $0x18] sm:$0xf]
  %v23 = vld [vmem:[%s1 + $0x1c] sm:$0xf]
  %v24 = vld [vmem:[%s1 + $0x20] sm:$0xf]
  %v25 = vld [vmem:[%s1 + $0x24] sm:$0xf]
  %v26 = vld [vmem:[%s1 + $0x28] sm:$0xf]
  %v27 = vld [vmem:[%s1 + $0x2c] sm:$0xf]
  %v28 = vld [vmem:[%s1 + $0x30] sm:$0xf]
  %v29 = vld [vmem:[%s1 + $0x34] sm:$0xf]
  %v30 = vld [vmem:[%s1 + $0x38] sm:$0xf]
  %v31 = vld [vmem:[%s1 + $0x3c] sm:$0xf]
  %v32 = vld [vmem:[%s2] sm:$0x1]
  %v34 = vlaneseq
  %v35 = vshrl.u32 %v34, 7
  %v36 = vsub.s32 0, %v35
  %v37 = vrot.slane %v32, %v36
  %v55 = vunpack.c.l.b16 %v16
  %v56 = vunpack.c.l.b16 %v17
  %v57 = vunpack.c.l.b16 %v18
  %v58 = vunpack.c.l.b16 %v19
  %v59 = vunpack.c.l.b16 %v20
  %v60 = vunpack.c.l.b16 %v21
  %v61 = vunpack.c.l.b16 %v22
  %v62 = vunpack.c.l.b16 %v23
  %v63 = vunpack.c.l.b16 %v24
  %v64 = vunpack.c.l.b16 %v25
  %v65 = vunpack.c.l.b16 %v26
  %v66 = vunpack.c.l.b16 %v27
  %v67 = vunpack.c.l.b16 %v28
  %v68 = vunpack.c.l.b16 %v29
  %v69 = vunpack.c.l.b16 %v30
  %v70 = vunpack.c.l.b16 %v31
  %v71 = vpack.c.b16 %v56, %v55
  %v72 = vpack.c.b16 %v58, %v57
  %v73 = vpack.c.b16 %v60, %v59
  %v74 = vpack.c.b16 %v62, %v61
  %v75 = vpack.c.b16 %v64, %v63
  %v76 = vpack.c.b16 %v66, %v65
  %v77 = vpack.c.b16 %v68, %v67
  %v78 = vpack.c.b16 %v70, %v69
  %87 = vmatprep.subr.bf16.mxu0 0
  %88 = vmatpush1.bf16.msra.mxu0 %v78
  %89 = vmatprep.subr.bf16.mxu0 0
  %90 = vmatpush1.bf16.msra.mxu0 %v77
  %91 = vmatprep.subr.bf16.mxu0 0
  %92 = vmatpush1.bf16.msra.mxu0 %v76
  %93 = vmatprep.subr.bf16.mxu0 0
  %94 = vmatpush1.bf16.msra.mxu0 %v75
  %95 = vmatprep.subr.bf16.mxu0 0
  %96 = vmatpush1.bf16.msra.mxu0 %v74
  %97 = vmatprep.subr.bf16.mxu0 0
  %98 = vmatpush1.bf16.msra.mxu0 %v73
  %99 = vmatprep.subr.bf16.mxu0 0
  %100 = vmatpush1.bf16.msra.mxu0 %v72
  %101 = vmatprep.subr.bf16.mxu0 0
  %102 = vmatpush1.bf16.msra.mxu0 %v71
  %103 = vmatprep.subr.bf16.mxu0 0
  %104 = vmatpush2.bf16.msra.mxu0 0
  %105 = vmatprep.subr.bf16.mxu0 0
  %106 = vmatpush2.bf16.msra.mxu0 0
  %107 = vmatprep.subr.bf16.mxu0 0
  %108 = vmatpush2.bf16.msra.mxu0 0
  %109 = vmatprep.subr.bf16.mxu0 0
  %110 = vmatpush2.bf16.msra.mxu0 0
  %111 = vmatprep.subr.bf16.mxu0 0
  %112 = vmatpush2.bf16.msra.mxu0 0
  %113 = vmatprep.subr.bf16.mxu0 0
  %114 = vmatpush2.bf16.msra.mxu0 0
  %115 = vmatprep.subr.bf16.mxu0 0
  %116 = vmatpush2.bf16.msra.mxu0 0
  %117 = vmatprep.subr.bf16.mxu0 0
  %118 = vmatpush2.bf16.msra.mxu0 0
  %119 = vmatprep.mubr.bf16.mxu0 0
  %120 = vmatmul.mubr.bf16.gmra.mxu0 %v15
  %v121 = vpop.f32.mrf.mxu0
  %v122 = vadd.f32 %v37, %v121
  %v123 = vpop.f32.mrf.mxu0
  %v124 = vpop.f32.mrf.mxu0
  %v125 = vpop.f32.mrf.mxu0
  %126 = vdwg.mxu0
  %vm127 = vcmask 130048
  %128 = vst.msk [vmem:[%s3] sm:$0xff] %vm127, %v122
  // Predicated region
  $region14: #{_lambda_.11} parent=0 // pred_check
    _
  $region15: #{_lambda_.11} parent=0 // pred_check_branch
    %130 = sbr.rel (0) target = $region17
  $region16: #{_lambda_.11} parent=0 // pred_region
    _
  $region17: #{_lambda_.11} parent=0 // pred_fallthru
    _
  // Predicated region
  $region18: #{_lambda_.11} parent=0 // pred_check
    _
  $region19: #{_lambda_.11} parent=0 // pred_check_branch
    %132 = sbr.rel (0) target = $region21
  $region20: #{_lambda_.11} parent=0 // pred_region
    _
  $region21: #{_lambda_.11} parent=0 // pred_fallthru
    _

// kernel: _lambda_.12
$region0: #{_lambda_.12}
  #allocation0 [shape = 'u32[]', space=smem, size = 0x4, offset = 0x4, fixed_abs, tag = 'smem constant byte address 0x4 - core index']
  #allocation1 [shape = 'u32[144,128]{1,0:T(1,128)}', space=vmem, size = 0x12000, scoped, tag = 'internal scratch']
  %s0 = inlined_call_operand.vmem [shape: bf16[8,128], index: 0, kind: input, shape index: {}]
  %s1 = inlined_call_operand.vmem [shape: bf16[128,16], index: 1, kind: input, shape index: {}]
  %s2 = inlined_call_operand.vmem [shape: f32[1,16], index: 2, kind: input, shape index: {}]
  %s3 = inlined_call_operand.vmem [shape: f32[8,16], index: 3, kind: output, shape index: {}]
  %s4 = sld [smem:[#allocation0]]
  $region22: #{_lambda_.12} parent=0
    _
  %s6 = ssub.s32 1, %s4
  %s7 = scalar_select 0, %s6, %s4
  // Predicated region
  $region2: #{_lambda_.12} parent=0 // pred_check
    _
  $region3: #{_lambda_.12} parent=0 // pred_check_branch
    %9 = sbr.rel (0) target = $region5
  $region4: #{_lambda_.12} parent=0 // pred_region
    _
  $region5: #{_lambda_.12} parent=0 // pred_fallthru
    _
  // Predicated region
  $region6: #{_lambda_.12} parent=0 // pred_check
    _
  $region7: #{_lambda_.12} parent=0 // pred_check_branch
    %11 = sbr.rel (0) target = $region9
  $region8: #{_lambda_.12} parent=0 // pred_region
    _
  $region9: #{_lambda_.12} parent=0 // pred_fallthru
    _
  // Predicated region
  $region10: #{_lambda_.12} parent=0 // pred_check
    _
  $region11: #{_lambda_.12} parent=0 // pred_check_branch
    %13 = sbr.rel (0) target = $region13
  $region12: #{_lambda_.12} parent=0 // pred_region
    _
  $region13: #{_lambda_.12} parent=0 // pred_fallthru
    _
  %v15 = vld [vmem:[%s0] sm:$0xf]
  %v16 = vld [vmem:[%s1] sm:$0xf]
  %v17 = vld [vmem:[%s1 + $0x4] sm:$0xf]
  %v18 = vld [vmem:[%s1 + $0x8] sm:$0xf]
  %v19 = vld [vmem:[%s1 + $0xc] sm:$0xf]
  %v20 = vld [vmem:[%s1 + $0x10] sm:$0xf]
  %v21 = vld [vmem:[%s1 + $0x14] sm:$0xf]
  %v22 = vld [vmem:[%s1 + $0x18] sm:$0xf]
  %v23 = vld [vmem:[%s1 + $0x1c] sm:$0xf]
  %v24 = vld [vmem:[%s1 + $0x20] sm:$0xf]
  %v25 = vld [vmem:[%s1 + $0x24] sm:$0xf]
  %v26 = vld [vmem:[%s1 + $0x28] sm:$0xf]
  %v27 = vld [vmem:[%s1 + $0x2c] sm:$0xf]
  %v28 = vld [vmem:[%s1 + $0x30] sm:$0xf]
  %v29 = vld [vmem:[%s1 + $0x34] sm:$0xf]
  %v30 = vld [vmem:[%s1 + $0x38] sm:$0xf]
  %v31 = vld [vmem:[%s1 + $0x3c] sm:$0xf]
  %v32 = vld [vmem:[%s2] sm:$0x1]
  %v34 = vlaneseq
  %v35 = vshrl.u32 %v34, 7
  %v36 = vsub.s32 0, %v35
  %v37 = vrot.slane %v32, %v36
  %v55 = vunpack.c.l.b16 %v16
  %v56 = vunpack.c.l.b16 %v17
  %v57 = vunpack.c.l.b16 %v18
  %v58 = vunpack.c.l.b16 %v19
  %v59 = vunpack.c.l.b16 %v20
  %v60 = vunpack.c.l.b16 %v21
  %v61 = vunpack.c.l.b16 %v22
  %v62 = vunpack.c.l.b16 %v23
  %v63 = vunpack.c.l.b16 %v24
  %v64 = vunpack.c.l.b16 %v25
  %v65 = vunpack.c.l.b16 %v26
  %v66 = vunpack.c.l.b16 %v27
  %v67 = vunpack.c.l.b16 %v28
  %v68 = vunpack.c.l.b16 %v29
  %v69 = vunpack.c.l.b16 %v30
  %v70 = vunpack.c.l.b16 %v31
  %v71 = vpack.c.b16 %v56, %v55
  %v72 = vpack.c.b16 %v58, %v57
  %v73 = vpack.c.b16 %v60, %v59
  %v74 = vpack.c.b16 %v62, %v61
  %v75 = vpack.c.b16 %v64, %v63
  %v76 = vpack.c.b16 %v66, %v65
  %v77 = vpack.c.b16 %v68, %v67
  %v78 = vpack.c.b16 %v70, %v69
  %87 = vmatprep.subr.bf16.mxu0 0
  %88 = vmatpush1.bf16.msra.mxu0 %v78
  %89 = vmatprep.subr.bf16.mxu0 0
  %90 = vmatpush1.bf16.msra.mxu0 %v77
  %91 = vmatprep.subr.bf16.mxu0 0
  %92 = vmatpush1.bf16.msra.mxu0 %v76
  %93 = vmatprep.subr.bf16.mxu0 0
  %94 = vmatpush1.bf16.msra.mxu0 %v75
  %95 = vmatprep.subr.bf16.mxu0 0
  %96 = vmatpush1.bf16.msra.mxu0 %v74
  %97 = vmatprep.subr.bf16.mxu0 0
  %98 = vmatpush1.bf16.msra.mxu0 %v73
  %99 = vmatprep.subr.bf16.mxu0 0
  %100 = vmatpush1.bf16.msra.mxu0 %v72
  %101 = vmatprep.subr.bf16.mxu0 0
  %102 = vmatpush1.bf16.msra.mxu0 %v71
  %103 = vmatprep.subr.bf16.mxu0 0
  %104 = vmatpush2.bf16.msra.mxu0 0
  %105 = vmatprep.subr.bf16.mxu0 0
  %106 = vmatpush2.bf16.msra.mxu0 0
  %107 = vmatprep.subr.bf16.mxu0 0
  %108 = vmatpush2.bf16.msra.mxu0 0
  %109 = vmatprep.subr.bf16.mxu0 0
  %110 = vmatpush2.bf16.msra.mxu0 0
  %111 = vmatprep.subr.bf16.mxu0 0
  %112 = vmatpush2.bf16.msra.mxu0 0
  %113 = vmatprep.subr.bf16.mxu0 0
  %114 = vmatpush2.bf16.msra.mxu0 0
  %115 = vmatprep.subr.bf16.mxu0 0
  %116 = vmatpush2.bf16.msra.mxu0 0
  %117 = vmatprep.subr.bf16.mxu0 0
  %118 = vmatpush2.bf16.msra.mxu0 0
  %119 = vmatprep.mubr.bf16.mxu0 0
  %120 = vmatmul.mubr.bf16.gmra.mxu0 %v15
  %v121 = vpop.f32.mrf.mxu0
  %v122 = vadd.f32 %v37, %v121
  %v123 = vpop.f32.mrf.mxu0
  %v124 = vpop.f32.mrf.mxu0
  %v125 = vpop.f32.mrf.mxu0
  %126 = vdwg.mxu0
  %v127 = vmax.f32 %v122, 0.0
  %vm128 = vcmask 130048
  %129 = vst.msk [vmem:[%s3] sm:$0xff] %vm128, %v127
  // Predicated region
  $region14: #{_lambda_.12} parent=0 // pred_check
    _
  $region15: #{_lambda_.12} parent=0 // pred_check_branch
    %131 = sbr.rel (0) target = $region17
  $region16: #{_lambda_.12} parent=0 // pred_region
    _
  $region17: #{_lambda_.12} parent=0 // pred_fallthru
    _
  // Predicated region
  $region18: #{_lambda_.12} parent=0 // pred_check
    _
  $region19: #{_lambda_.12} parent=0 // pred_check_branch
    %133 = sbr.rel (0) target = $region21
  $region20: #{_lambda_.12} parent=0 // pred_region
    _
  $region21: #{_lambda_.12} parent=0 // pred_fallthru
    _

// kernel: _lambda_.13
$region0: #{_lambda_.13}
  #allocation0 [shape = 'u32[]', space=smem, size = 0x4, offset = 0x4, fixed_abs, tag = 'smem constant byte address 0x4 - core index']
  #allocation1 [shape = 'u32[144,128]{1,0:T(1,128)}', space=vmem, size = 0x12000, scoped, tag = 'internal scratch']
  %s0 = inlined_call_operand.vmem [shape: bf16[8,256], index: 0, kind: input, shape index: {}]
  %s1 = inlined_call_operand.vmem [shape: bf16[256,16], index: 1, kind: input, shape index: {}]
  %s2 = inlined_call_operand.vmem [shape: f32[1,16], index: 2, kind: input, shape index: {}]
  %s3 = inlined_call_operand.vmem [shape: f32[8,16], index: 3, kind: input, shape index: {}]
  %s4 = inlined_call_operand.hbm [shape: f32[8,16], index: 4, kind: output, shape index: {}]
  %s5 = sld [smem:[#allocation0]]
  $region26: #{_lambda_.13} parent=0
    _
  %s7 = ssub.s32 1, %s5
  %s8 = scalar_select 0, %s7, %s5
  $region1: #{_lambda_.13} parent=0
    #allocation2 [shape = 'u8[4096]{0}', space=vmem, size = 0x1000, scoped, tag = 'output window, operand 0, single buffered']
    #allocation3 [shape = 's32[1]{0}', space=sflag, size = 0x4, scoped, tag = 'scoped memory for _lambda_.13']
    %9 = vsyncpa [#allocation3], 0
    // Predicated region
    $region2: #{_lambda_.13} parent=1 // pred_check
      _
    $region3: #{_lambda_.13} parent=1 // pred_check_branch
      %11 = sbr.rel (0) target = $region5
    $region4: #{_lambda_.13} parent=1 // pred_region
      _
    $region5: #{_lambda_.13} parent=1 // pred_fallthru
      _
    // Predicated region
    $region6: #{_lambda_.13} parent=1 // pred_check
      _
    $region7: #{_lambda_.13} parent=1 // pred_check_branch
      %13 = sbr.rel (0) target = $region9
    $region8: #{_lambda_.13} parent=1 // pred_region
      _
    $region9: #{_lambda_.13} parent=1 // pred_fallthru
      _
    // Predicated region
    $region10: #{_lambda_.13} parent=1 // pred_check
      _
    $region11: #{_lambda_.13} parent=1 // pred_check_branch
      %15 = sbr.rel (0) target = $region13
    $region12: #{_lambda_.13} parent=1 // pred_region
      _
    $region13: #{_lambda_.13} parent=1 // pred_fallthru
      _
    // Predicated region
    $region14: #{_lambda_.13} parent=1 // pred_check
      _
    $region15: #{_lambda_.13} parent=1 // pred_check_branch
      %17 = sbr.rel (0) target = $region17
    $region16: #{_lambda_.13} parent=1 // pred_region
      _
    $region17: #{_lambda_.13} parent=1 // pred_fallthru
      _
    %v19 = vld [vmem:[%s0] sm:$0xff]
    %v20 = vld [vmem:[%s1] sm:$0xf]
    %v21 = vld [vmem:[%s1 + $0x4] sm:$0xf]
    %v22 = vld [vmem:[%s1 + $0x8] sm:$0xf]
    %v23 = vld [vmem:[%s1 + $0xc] sm:$0xf]
    %v24 = vld [vmem:[%s1 + $0x10] sm:$0xf]
    %v25 = vld [vmem:[%s1 + $0x14] sm:$0xf]
    %v26 = vld [vmem:[%s1 + $0x18] sm:$0xf]
    %v27 = vld [vmem:[%s1 + $0x1c] sm:$0xf]
    %v28 = vld [vmem:[%s1 + $0x20] sm:$0xf]
    %v29 = vld [vmem:[%s1 + $0x24] sm:$0xf]
    %v30 = vld [vmem:[%s1 + $0x28] sm:$0xf]
    %v31 = vld [vmem:[%s1 + $0x2c] sm:$0xf]
    %v32 = vld [vmem:[%s1 + $0x30] sm:$0xf]
    %v33 = vld [vmem:[%s1 + $0x34] sm:$0xf]
    %v34 = vld [vmem:[%s1 + $0x38] sm:$0xf]
    %v35 = vld [vmem:[%s1 + $0x3c] sm:$0xf]
    %v36 = vld [vmem:[%s1 + $0x40] sm:$0xf]
    %v37 = vld [vmem:[%s1 + $0x44] sm:$0xf]
    %v38 = vld [vmem:[%s1 + $0x48] sm:$0xf]
    %v39 = vld [vmem:[%s1 + $0x4c] sm:$0xf]
    %v40 = vld [vmem:[%s1 + $0x50] sm:$0xf]
    %v41 = vld [vmem:[%s1 + $0x54] sm:$0xf]
    %v42 = vld [vmem:[%s1 + $0x58] sm:$0xf]
    %v43 = vld [vmem:[%s1 + $0x5c] sm:$0xf]
    %v44 = vld [vmem:[%s1 + $0x60] sm:$0xf]
    %v45 = vld [vmem:[%s1 + $0x64] sm:$0xf]
    %v46 = vld [vmem:[%s1 + $0x68] sm:$0xf]
    %v47 = vld [vmem:[%s1 + $0x6c] sm:$0xf]
    %v48 = vld [vmem:[%s1 + $0x70] sm:$0xf]
    %v49 = vld [vmem:[%s1 + $0x74] sm:$0xf]
    %v50 = vld [vmem:[%s1 + $0x78] sm:$0xf]
    %v51 = vld [vmem:[%s1 + $0x7c] sm:$0xf]
    %v52 = vld [vmem:[%s2] sm:$0x1]
    %v54 = vlaneseq
    %v55 = vshrl.u32 %v54, 7
    %v56 = vsub.s32 0, %v55
    %v57 = vrot.slane %v52, %v56
    %v60 = vunpack.c.l.b16 %v19
    %v61 = vunpack.c.h.b16 %v19
    %v62 = vpack.c.b16 %v60, %v60
    %v63 = vpack.c.b16 %v61, %v61
    %v98 = vunpack.c.l.b16 %v20
    %v99 = vunpack.c.l.b16 %v21
    %v100 = vunpack.c.l.b16 %v22
    %v101 = vunpack.c.l.b16 %v23
    %v102 = vunpack.c.l.b16 %v24
    %v103 = vunpack.c.l.b16 %v25
    %v104 = vunpack.c.l.b16 %v26
    %v105 = vunpack.c.l.b16 %v27
    %v106 = vunpack.c.l.b16 %v28
    %v107 = vunpack.c.l.b16 %v29
    %v108 = vunpack.c.l.b16 %v30
    %v109 = vunpack.c.l.b16 %v31
    %v110 = vunpack.c.l.b16 %v32
    %v111 = vunpack.c.l.b16 %v33
    %v112 = vunpack.c.l.b16 %v34
    %v113 = vunpack.c.l.b16 %v35
    %v114 = vunpack.c.l.b16 %v36
    %v115 = vunpack.c.l.b16 %v37
    %v116 = vunpack.c.l.b16 %v38
    %v117 = vunpack.c.l.b16 %v39
    %v118 = vunpack.c.l.b16 %v40
    %v119 = vunpack.c.l.b16 %v41
    %v120 = vunpack.c.l.b16 %v42
    %v121 = vunpack.c.l.b16 %v43
    %v122 = vunpack.c.l.b16 %v44
    %v123 = vunpack.c.l.b16 %v45
    %v124 = vunpack.c.l.b16 %v46
    %v125 = vunpack.c.l.b16 %v47
    %v126 = vunpack.c.l.b16 %v48
    %v127 = vunpack.c.l.b16 %v49
    %v128 = vunpack.c.l.b16 %v50
    %v129 = vunpack.c.l.b16 %v51
    %v130 = vpack.c.b16 %v99, %v98
    %v131 = vpack.c.b16 %v101, %v100
    %v132 = vpack.c.b16 %v103, %v102
    %v133 = vpack.c.b16 %v105, %v104
    %v134 = vpack.c.b16 %v107, %v106
    %v135 = vpack.c.b16 %v109, %v108
    %v136 = vpack.c.b16 %v111, %v110
    %v137 = vpack.c.b16 %v113, %v112
    %v138 = vpack.c.b16 %v115, %v114
    %v139 = vpack.c.b16 %v117, %v116
    %v140 = vpack.c.b16 %v119, %v118
    %v141 = vpack.c.b16 %v121, %v120
    %v142 = vpack.c.b16 %v123, %v122
    %v143 = vpack.c.b16 %v125, %v124
    %v144 = vpack.c.b16 %v127, %v126
    %v145 = vpack.c.b16 %v129, %v128
    %162 = vmatprep.subr.bf16.mxu0 0
    %163 = vmatpush1.bf16.msra.mxu0 %v137
    %164 = vmatprep.subr.bf16.mxu0 0
    %165 = vmatpush1.bf16.msra.mxu0 %v136
    %166 = vmatprep.subr.bf16.mxu0 0
    %167 = vmatpush1.bf16.msra.mxu0 %v135
    %168 = vmatprep.subr.bf16.mxu0 0
    %169 = vmatpush1.bf16.msra.mxu0 %v134
    %170 = vmatprep.subr.bf16.mxu0 0
    %171 = vmatpush1.bf16.msra.mxu0 %v133
    %172 = vmatprep.subr.bf16.mxu0 0
    %173 = vmatpush1.bf16.msra.mxu0 %v132
    %174 = vmatprep.subr.bf16.mxu0 0
    %175 = vmatpush1.bf16.msra.mxu0 %v131
    %176 = vmatprep.subr.bf16.mxu0 0
    %177 = vmatpush1.bf16.msra.mxu0 %v130
    %178 = vmatprep.subr.bf16.mxu0 0
    %179 = vmatpush2.bf16.msra.mxu0 %v145
    %180 = vmatprep.subr.bf16.mxu0 0
    %181 = vmatpush2.bf16.msra.mxu0 %v144
    %182 = vmatprep.subr.bf16.mxu0 0
    %183 = vmatpush2.bf16.msra.mxu0 %v143
    %184 = vmatprep.subr.bf16.mxu0 0
    %185 = vmatpush2.bf16.msra.mxu0 %v142
    %186 = vmatprep.subr.bf16.mxu0 0
    %187 = vmatpush2.bf16.msra.mxu0 %v141
    %188 = vmatprep.subr.bf16.mxu0 0
    %189 = vmatpush2.bf16.msra.mxu0 %v140
    %190 = vmatprep.subr.bf16.mxu0 0
    %191 = vmatpush2.bf16.msra.mxu0 %v139
    %192 = vmatprep.subr.bf16.mxu0 0
    %193 = vmatpush2.bf16.msra.mxu0 %v138
    %194 = vmatprep.mubr.bf16.mxu0 %v63
    %195 = vmatmul.mubr.bf16.gmra.mxu0 %v62
    %v196 = vpop.f32.mrf.mxu0
    %v197 = vadd.f32 %v57, %v196
    %v198 = vpop.f32.mrf.mxu0
    %v199 = vpop.f32.mrf.mxu0
    %v200 = vpop.f32.mrf.mxu0
    %201 = vdwg.mxu0
    %v202 = vld [vmem:[%s3] sm:$0xff]
    %v203 = vadd.f32 %v197, %v202
    %v204 = vmax.f32 %v203, 0.0
    %vm205 = vcmask 130048
    %206 = vst.msk [vmem:[#allocation2] sm:$0xff] %vm205, %v204
    // Predicated region
    $region18: #{_lambda_.13} parent=1 // pred_check
      _
    $region19: #{_lambda_.13} parent=1 // pred_check_branch
      %208 = sbr.rel (0) target = $region21
    $region20: #{_lambda_.13} parent=1 // pred_region
      %s210 = ssub.s32 128, 128
      %211 = vsyncadd [#allocation3], %s210
      %s213 = sshll.u32 [#allocation2], 4
      %s214 = int_to_ptr.vmem [resolvable:$true] %s213
      %216 = dma.vmem_to_hbm [thread:$0]  %s214, 128, %s4, [#allocation3]
    $region21: #{_lambda_.13} parent=1 // pred_fallthru
      _
    // Predicated region
    $region22: #{_lambda_.13} parent=1 // pred_check
      _
    $region23: #{_lambda_.13} parent=1 // pred_check_branch
      %218 = sbr.rel (0) target = $region25
    $region24: #{_lambda_.13} parent=1 // pred_region
      %219 = dma.done [#allocation3], 128
    $region25: #{_lambda_.13} parent=1 // pred_fallthru
      _
    %220 = vsyncpa [#allocation3], 1

</llo_original>
